<compile_context>
chip_gen: v5e
topology: v5e:2x2
jax: 0.10.0
libtpu: 0.0.40
codegen_flags: <defaults>
</compile_context>

<pallas_src>
import numpy as np
import jax
import jax.numpy as jnp
from jax import lax
from jax.experimental import pallas as pl
from jax.experimental.pallas import tpu as pltpu

# ----- static sizes (small, synthetic) ---------------------------------------
N_BOXES = 8           # max detections (padded)
C = 4                 # crop channels (3 RGB in the real model)
HW = 256              # flattened 16x16 crop (real model resizes crops to 224x224)
CHW = C * HW          # 1024 : crops are fed to the kernel as (N, C*HW)
HID = 32              # hidden width of the synthetic classifier head
HID_PAD = 128         # lane-padded hidden width (zero-padded weights)
NUM_CLASSES = 39      # len(self.mapper)
CLS_PAD = 128         # lane-padded class width (-inf padded bias -> probs == 0)
META_W = 128          # lane-dense metadata slab width
SCORE_THRESH = 0.21
NMS_IOU = 0.1
DET_SIZE = 512.0
NEG = -1e30

MAPPER = ['TH', 'ACB', 'Acecook', 'Addidas', 'Agribank', 'Bidv', 'Big C', 'Cai Lan',
          'Chinsu', 'Colgate', 'FPT', 'Habeco', 'Hai Ha', 'Jollibee', 'KFC', 'Kinh Do',
          'Lotte mart', 'Mbbank new', 'Mbbank old', 'Neptune', 'Nike', 'Pepsi',
          'Petrolimex', 'Phuc Long', 'Samsung', 'SHB', 'Techcombank', 'The Coffe House',
          'The gioi di dong', 'TPbank', 'Vietcombank', 'Vietinbank', 'Viettel',
          'Vinamilk', 'Vinfast', 'Vinmart', 'Vifon', 'Vnpt', 'Vpbank']


# ---------------------------------------------------------------- kernel -----
def fused_predictor_kernel(boxes_ref, scores_ref, x_ref, scale_ref,
                           w1_ref, b1_ref, w2_ref, b2_ref,
                           probs_ref, meta_ref):
    """Single fused kernel: boxes/NMS/classifier; only two lane-dense HBM stores."""
    f32 = jnp.float32
    boxes = boxes_ref[...]                     # (N,4) raw 512-space (unclipped, like reference NMS)
    scores = scores_ref[...]                   # (N,1)

    # ---- 1) clip to [0,511] + rescale to original image size -----------------
    sx = scale_ref[0]                          # orig_w / 512   (SMEM scalar)
    sy = scale_ref[1]                          # orig_h / 512   (SMEM scalar)
    lane4 = lax.broadcasted_iota(jnp.int32, (1, 4), 1)
    scale_row = jnp.where((lane4 & 1) == 0, sx, sy)          # [sx, sy, sx, sy]
    scaled_boxes = jnp.clip(boxes, 0.0, DET_SIZE - 1.0) * scale_row   # (N,4)

    # ---- 2) pairwise IoU (no transposed input; transpose done in-kernel) -----
    x1, y1, x2, y2 = boxes[:, 0:1], boxes[:, 1:2], boxes[:, 2:3], boxes[:, 3:4]  # (N,1)
    sub_nn = lax.broadcasted_iota(jnp.int32, (N_BOXES, N_BOXES), 0)
    lane_nn = lax.broadcasted_iota(jnp.int32, (N_BOXES, N_BOXES), 1)
    diag = sub_nn == lane_nn

    def col_to_row(col):                        # (N,1) -> (1,N) via diag-select + sublane reduce
        return jnp.sum(jnp.where(diag, col, 0.0), axis=0, keepdims=True)

    area = (x2 - x1) * (y2 - y1)                # (N,1)
    x1t, y1t, x2t, y2t = col_to_row(x1), col_to_row(y1), col_to_row(x2), col_to_row(y2)
    area_t = col_to_row(area)                   # (1,N)
    w = jnp.maximum(jnp.minimum(x2, x2t) - jnp.maximum(x1, x1t), 0.0)
    h = jnp.maximum(jnp.minimum(y2, y2t) - jnp.maximum(y1, y1t), 0.0)
    inter = w * h                               # (N,N)
    union = area + area_t - inter + 1e-9
    iou = inter * pl.reciprocal(union, approx=True)           # (N,N), EUP reciprocal

    # ---- 3) greedy NMS (torchvision semantics), sort-free, fully unrolled ----
    sub_col_f = lax.broadcasted_iota(jnp.int32, (N_BOXES, 1), 0).astype(f32)    # (N,1)
    lane_nn_f = lane_nn.astype(f32)                                             # (N,N)
    remaining0 = jnp.where(scores > SCORE_THRESH, 1.0, 0.0).astype(f32)         # score threshold
    keep0 = jnp.zeros((N_BOXES, 1), f32)

    def nms_body(_, carry):
        remaining, keep = carry
        masked = jnp.where(remaining > 0.5, scores, NEG)                 # (N,1)
        m = jnp.max(masked, axis=0, keepdims=True)                       # (1,1)
        i_f = jnp.min(jnp.where(masked == m, sub_col_f, float(N_BOXES)),
                      axis=0, keepdims=True)                             # (1,1) best index
        sel = (sub_col_f == i_f).astype(f32)                             # (N,1) one-hot
        keep = jnp.maximum(keep, sel * remaining)                        # keep box i if still active
        iou_col = jnp.sum(jnp.where(lane_nn_f == i_f, iou, 0.0),
                          axis=1, keepdims=True)                         # (N,1) = iou[:, i] (symmetric)
        suppress = jnp.where((iou_col > NMS_IOU) | (sub_col_f == i_f), 1.0, 0.0)
        remaining = remaining * (1.0 - suppress)                         # suppressed boxes can't suppress
        return remaining, keep

    _, keep_f = lax.fori_loop(0, N_BOXES, nms_body, (remaining0, keep0), unroll=True)

    # ---- 4) classifier head: GAP+/255 folded into first matmul, padded lanes -
    x = x_ref[...]                                                       # (N, C*HW) raw 0..255
    hdn = jnp.maximum(
        jnp.dot(x, w1_ref[...], preferred_element_type=f32) + b1_ref[...], 0.0)   # (N,128)
    logits = jnp.dot(hdn, w2_ref[...], preferred_element_type=f32) + b2_ref[...]  # (N,128), pad = -1e30
    m2 = jnp.max(logits, axis=-1, keepdims=True)
    e = jnp.exp(logits - m2)
    probs = e * pl.reciprocal(jnp.sum(e, axis=-1, keepdims=True), approx=True)    # padded probs == 0
    probs_ref[...] = probs                                               # lane-dense (8,128) store

    lane_cls_f = lax.broadcasted_iota(jnp.int32, (N_BOXES, CLS_PAD), 1).astype(f32)
    label_f = jnp.min(jnp.where(logits == m2, lane_cls_f, float(CLS_PAD)),
                      axis=-1, keepdims=True)                            # (N,1) argmax as f32
    score_clf = jnp.max(probs, axis=-1, keepdims=True)                   # (N,1)

    # ---- 5) metadata slab (lane-dense (8,128) single DMA to HBM) -------------
    meta_ref[...] = jnp.zeros_like(meta_ref)
    meta_ref[:, 0:4] = scaled_boxes
    meta_ref[:, 4:5] = keep_f
    meta_ref[:, 5:6] = label_f
    meta_ref[:, 6:7] = score_clf
    meta_ref[:, 7:8] = scores


# ----------------------------------------------------------- pallas wrapper --
def predictor_forward(boxes512, scores, crops_flat, scale, w1_fold, b1_pad, w2_pad, b2_pad):
    """Numeric core of Predictor.forward as ONE pallas_call (no grid, no extra XLA ops)."""
    vmem = pl.BlockSpec(memory_space=pltpu.MemorySpace.VMEM)
    probs_pad, meta = pl.pallas_call(
        fused_predictor_kernel,
        out_shape=(
            jax.ShapeDtypeStruct((N_BOXES, CLS_PAD), jnp.float32),   # padded softmax probs
            jax.ShapeDtypeStruct((N_BOXES, META_W), jnp.float32),    # boxes/keep/label/scores slab
        ),
        in_specs=[
            vmem,                                                   # boxes512   (8,4)
            vmem,                                                   # scores     (8,1)
            vmem,                                                   # crops_flat (8,1024)
            pl.BlockSpec(memory_space=pltpu.MemorySpace.SMEM),      # scale      (2,) scalars
            vmem,                                                   # w1_fold    (1024,128)
            vmem,                                                   # b1_pad     (1,128)
            vmem,                                                   # w2_pad     (128,128)
            vmem,                                                   # b2_pad     (1,128)
        ],
        out_specs=(vmem, vmem),
    )(boxes512, scores, crops_flat, scale, w1_fold, b1_pad, w2_pad, b2_pad)
    return probs_pad, meta


def prepare_classifier_params(w1, b1, w2, b2):
    """Fold /255 + global-average-pool into the first dense; lane-pad to 128.
    Padded hidden units are zero; padded class logits get a -1e30 bias so their
    softmax probability is exactly 0 and argmax is unchanged."""
    w1_fold = jnp.repeat(w1, HW, axis=0) * (1.0 / (HW * 255.0))          # (C*HW, HID)
    w1_fold = jnp.pad(w1_fold, ((0, 0), (0, HID_PAD - HID)))             # (1024, 128)
    b1_pad = jnp.pad(b1.reshape(1, HID), ((0, 0), (0, HID_PAD - HID)))   # (1, 128)
    w2_pad = jnp.pad(w2, ((0, HID_PAD - HID), (0, CLS_PAD - NUM_CLASSES)))   # (128, 128)
    b2_pad = jnp.pad(b2.reshape(1, NUM_CLASSES),
                     ((0, 0), (0, CLS_PAD - NUM_CLASSES)),
                     constant_values=NEG)                                # (1, 128)
    return (w1_fold.astype(jnp.float32), b1_pad.astype(jnp.float32),
            w2_pad.astype(jnp.float32), b2_pad.astype(jnp.float32))


# ------------------------------------------------------------------ main -----
if __name__ == "__main__":
    key = jax.random.PRNGKey(0)
    ks = jax.random.split(key, 6)

    # synthetic detector output in 512x512 space
    # TODO(synk): EfficientDet-d5 backbone + DetBenchPredict (checkpoint load) not reproduced.
    x1y1 = jax.random.uniform(ks[0], (N_BOXES, 2), minval=0.0, maxval=380.0)
    wh = jax.random.uniform(ks[1], (N_BOXES, 2), minval=30.0, maxval=130.0)
    boxes512 = jnp.concatenate([x1y1, x1y1 + wh], axis=-1).astype(jnp.float32)
    scores = jax.random.uniform(ks[2], (N_BOXES, 1), minval=0.0, maxval=1.0).astype(jnp.float32)

    # synthetic "resized crops" (stand-in for cv2 crop + resize of the original image)
    # TODO(synk): data-dependent crop + cv2.resize has no clean Pallas equivalent.
    crops = jax.random.uniform(ks[3], (N_BOXES, C, HW), minval=0.0, maxval=255.0).astype(jnp.float32)
    crops_flat = crops.reshape(N_BOXES, CHW)                 # (8, 1024) sublane/lane dense

    # deterministic synthetic classifier head parameters (stand-in for the Keras .h5 weights)
    w1 = (jax.random.normal(ks[4], (C, HID)) * 0.1).astype(jnp.float32)
    b1 = jnp.zeros((HID,), jnp.float32)
    w2 = (jax.random.normal(ks[5], (HID, NUM_CLASSES)) * 0.1).astype(jnp.float32)
    b2 = jnp.zeros((NUM_CLASSES,), jnp.float32)
    params = prepare_classifier_params(w1, b1, w2, b2)

    orig_h, orig_w = 480, 640                                # pretend original image size
    scale = jnp.array([orig_w / DET_SIZE, orig_h / DET_SIZE], dtype=jnp.float32)  # SMEM scalars

    probs_pad, meta = predictor_forward(boxes512, scores, crops_flat, scale, *params)
    probs_pad, meta = jax.block_until_ready((probs_pad, meta))

    # assemble the final `result` list exactly like the original forward()
    meta_np = np.asarray(meta)
    probs_np = np.asarray(probs_pad)[:, :NUM_CLASSES]
    keep_np = meta_np[:, 4] > 0.5
    result = []
    for i in np.where(keep_np)[0]:
        box = meta_np[i, 0:4].astype(np.int32)
        idx = int(meta_np[i, 5])
        result.append({"box": box, "label": MAPPER[idx],
                       "score_detect": float(meta_np[i, 7]),
                       "score_clf": float(meta_np[i, 6])})

    print("KERNEL_OK")
</pallas_src>

<mosaic_0001>
module attributes {stable_mosaic.version = 11 : i64} {
  func.func @fused_predictor_kernel(%arg0: memref<8x4xf32, #tpu.memory_space<vmem>>, %arg1: memref<8x1xf32, #tpu.memory_space<vmem>>, %arg2: memref<8x1024xf32, #tpu.memory_space<vmem>>, %arg3: memref<2xf32, #tpu.memory_space<smem>>, %arg4: memref<1024x128xf32, #tpu.memory_space<vmem>>, %arg5: memref<1x128xf32, #tpu.memory_space<vmem>>, %arg6: memref<128x128xf32, #tpu.memory_space<vmem>>, %arg7: memref<1x128xf32, #tpu.memory_space<vmem>>, %arg8: memref<8x128xf32, #tpu.memory_space<vmem>>, %arg9: memref<8x128xf32, #tpu.memory_space<vmem>>) attributes {dimension_semantics = [], scalar_prefetch = 0 : i64, scratch_operands = 0 : i64, tpu.core_type = #tpu.core_type<tc>} {
    %c0 = arith.constant 0 : index
    %c0_0 = arith.constant 0 : index
    %0 = vector.load %arg0[%c0, %c0_0] : memref<8x4xf32, #tpu.memory_space<vmem>>, vector<8x4xf32>
    %c0_1 = arith.constant 0 : index
    %c0_2 = arith.constant 0 : index
    %1 = vector.load %arg1[%c0_1, %c0_2] : memref<8x1xf32, #tpu.memory_space<vmem>>, vector<8x1xf32>
    %c0_3 = arith.constant 0 : index
    %2 = memref.load %arg3[%c0_3] : memref<2xf32, #tpu.memory_space<smem>>
    %c1 = arith.constant 1 : index
    %3 = memref.load %arg3[%c1] : memref<2xf32, #tpu.memory_space<smem>>
    %4 = tpu.iota {dimensions = array<i32: 1>} : vector<1x4xi32>
    %c1_i32 = arith.constant 1 : i32
    %5 = vector.broadcast %c1_i32 : i32 to vector<1x4xi32>
    %6 = arith.andi %4, %5 : vector<1x4xi32>
    %c0_i32 = arith.constant 0 : i32
    %7 = vector.broadcast %c0_i32 : i32 to vector<1x4xi32>
    %8 = arith.cmpi eq, %6, %7 : vector<1x4xi32>
    %9 = vector.broadcast %2 : f32 to vector<1x4xf32>
    %10 = vector.broadcast %3 : f32 to vector<1x4xf32>
    %11 = arith.select %8, %9, %10 : vector<1x4xi1>, vector<1x4xf32>
    %cst = arith.constant 0.000000e+00 : f32
    %cst_4 = arith.constant 5.110000e+02 : f32
    %12 = vector.broadcast %cst : f32 to vector<8x4xf32>
    %13 = arith.maximumf %12, %0 : vector<8x4xf32>
    %14 = vector.broadcast %cst_4 : f32 to vector<8x4xf32>
    %15 = arith.minimumf %14, %13 : vector<8x4xf32>
    %16 = vector.broadcast %11 : vector<1x4xf32> to vector<8x4xf32>
    %17 = arith.mulf %15, %16 : vector<8x4xf32>
    %18 = vector.extract_strided_slice %0 {offsets = [0, 0], sizes = [8, 1], strides = [1, 1]} : vector<8x4xf32> to vector<8x1xf32>
    %19 = vector.extract_strided_slice %0 {offsets = [0, 1], sizes = [8, 1], strides = [1, 1]} : vector<8x4xf32> to vector<8x1xf32>
    %20 = vector.extract_strided_slice %0 {offsets = [0, 2], sizes = [8, 1], strides = [1, 1]} : vector<8x4xf32> to vector<8x1xf32>
    %21 = vector.extract_strided_slice %0 {offsets = [0, 3], sizes = [8, 1], strides = [1, 1]} : vector<8x4xf32> to vector<8x1xf32>
    %22 = tpu.iota {dimensions = array<i32: 0>} : vector<8x8xi32>
    %23 = tpu.iota {dimensions = array<i32: 1>} : vector<8x8xi32>
    %24 = arith.cmpi eq, %22, %23 : vector<8x8xi32>
    %25 = arith.subf %20, %18 : vector<8x1xf32>
    %26 = arith.subf %21, %19 : vector<8x1xf32>
    %27 = arith.mulf %25, %26 : vector<8x1xf32>
    %cst_5 = arith.constant 0.000000e+00 : f32
    %28 = vector.shape_cast %18 : vector<8x1xf32> to vector<8x1xf32>
    %29 = vector.broadcast %28 : vector<8x1xf32> to vector<8x8xf32>
    %30 = vector.broadcast %cst_5 : f32 to vector<8x8xf32>
    %31 = arith.select %24, %29, %30 : vector<8x8xi1>, vector<8x8xf32>
    %cst_6 = arith.constant dense<0.000000e+00> : vector<8xf32>
    %32 = vector.multi_reduction <add>, %31, %cst_6 [0] : vector<8x8xf32> to vector<8xf32>
    %33 = vector.shape_cast %32 : vector<8xf32> to vector<1x8xf32>
    %cst_7 = arith.constant 0.000000e+00 : f32
    %34 = vector.shape_cast %19 : vector<8x1xf32> to vector<8x1xf32>
    %35 = vector.broadcast %34 : vector<8x1xf32> to vector<8x8xf32>
    %36 = vector.broadcast %cst_7 : f32 to vector<8x8xf32>
    %37 = arith.select %24, %35, %36 : vector<8x8xi1>, vector<8x8xf32>
    %cst_8 = arith.constant dense<0.000000e+00> : vector<8xf32>
    %38 = vector.multi_reduction <add>, %37, %cst_8 [0] : vector<8x8xf32> to vector<8xf32>
    %39 = vector.shape_cast %38 : vector<8xf32> to vector<1x8xf32>
    %cst_9 = arith.constant 0.000000e+00 : f32
    %40 = vector.shape_cast %20 : vector<8x1xf32> to vector<8x1xf32>
    %41 = vector.broadcast %40 : vector<8x1xf32> to vector<8x8xf32>
    %42 = vector.broadcast %cst_9 : f32 to vector<8x8xf32>
    %43 = arith.select %24, %41, %42 : vector<8x8xi1>, vector<8x8xf32>
    %cst_10 = arith.constant dense<0.000000e+00> : vector<8xf32>
    %44 = vector.multi_reduction <add>, %43, %cst_10 [0] : vector<8x8xf32> to vector<8xf32>
    %45 = vector.shape_cast %44 : vector<8xf32> to vector<1x8xf32>
    %cst_11 = arith.constant 0.000000e+00 : f32
    %46 = vector.shape_cast %21 : vector<8x1xf32> to vector<8x1xf32>
    %47 = vector.broadcast %46 : vector<8x1xf32> to vector<8x8xf32>
    %48 = vector.broadcast %cst_11 : f32 to vector<8x8xf32>
    %49 = arith.select %24, %47, %48 : vector<8x8xi1>, vector<8x8xf32>
    %cst_12 = arith.constant dense<0.000000e+00> : vector<8xf32>
    %50 = vector.multi_reduction <add>, %49, %cst_12 [0] : vector<8x8xf32> to vector<8xf32>
    %51 = vector.shape_cast %50 : vector<8xf32> to vector<1x8xf32>
    %cst_13 = arith.constant 0.000000e+00 : f32
    %52 = vector.shape_cast %27 : vector<8x1xf32> to vector<8x1xf32>
    %53 = vector.broadcast %52 : vector<8x1xf32> to vector<8x8xf32>
    %54 = vector.broadcast %cst_13 : f32 to vector<8x8xf32>
    %55 = arith.select %24, %53, %54 : vector<8x8xi1>, vector<8x8xf32>
    %cst_14 = arith.constant dense<0.000000e+00> : vector<8xf32>
    %56 = vector.multi_reduction <add>, %55, %cst_14 [0] : vector<8x8xf32> to vector<8xf32>
    %57 = vector.shape_cast %56 : vector<8xf32> to vector<1x8xf32>
    %58 = vector.broadcast %20 : vector<8x1xf32> to vector<8x8xf32>
    %59 = vector.broadcast %45 : vector<1x8xf32> to vector<8x8xf32>
    %60 = arith.minimumf %58, %59 : vector<8x8xf32>
    %61 = vector.broadcast %18 : vector<8x1xf32> to vector<8x8xf32>
    %62 = vector.broadcast %33 : vector<1x8xf32> to vector<8x8xf32>
    %63 = arith.maximumf %61, %62 : vector<8x8xf32>
    %64 = arith.subf %60, %63 : vector<8x8xf32>
    %cst_15 = arith.constant 0.000000e+00 : f32
    %65 = vector.broadcast %cst_15 : f32 to vector<8x8xf32>
    %66 = arith.maximumf %64, %65 : vector<8x8xf32>
    %67 = vector.broadcast %21 : vector<8x1xf32> to vector<8x8xf32>
    %68 = vector.broadcast %51 : vector<1x8xf32> to vector<8x8xf32>
    %69 = arith.minimumf %67, %68 : vector<8x8xf32>
    %70 = vector.broadcast %19 : vector<8x1xf32> to vector<8x8xf32>
    %71 = vector.broadcast %39 : vector<1x8xf32> to vector<8x8xf32>
    %72 = arith.maximumf %70, %71 : vector<8x8xf32>
    %73 = arith.subf %69, %72 : vector<8x8xf32>
    %cst_16 = arith.constant 0.000000e+00 : f32
    %74 = vector.broadcast %cst_16 : f32 to vector<8x8xf32>
    %75 = arith.maximumf %73, %74 : vector<8x8xf32>
    %76 = arith.mulf %66, %75 : vector<8x8xf32>
    %77 = vector.broadcast %27 : vector<8x1xf32> to vector<8x8xf32>
    %78 = vector.broadcast %57 : vector<1x8xf32> to vector<8x8xf32>
    %79 = arith.addf %77, %78 : vector<8x8xf32>
    %80 = arith.subf %79, %76 : vector<8x8xf32>
    %cst_17 = arith.constant 9.99999971E-10 : f32
    %81 = vector.broadcast %cst_17 : f32 to vector<8x8xf32>
    %82 = arith.addf %80, %81 : vector<8x8xf32>
    %83 = tpu.reciprocal %82 {approx = true} : vector<8x8xf32> -> vector<8x8xf32>
    %84 = arith.mulf %76, %83 : vector<8x8xf32>
    %85 = tpu.iota {dimensions = array<i32: 0>} : vector<8x1xi32>
    %86 = arith.sitofp %85 : vector<8x1xi32> to vector<8x1xf32>
    %87 = arith.sitofp %23 : vector<8x8xi32> to vector<8x8xf32>
    %cst_18 = arith.constant 2.100000e-01 : f32
    %88 = vector.broadcast %cst_18 : f32 to vector<8x1xf32>
    %89 = arith.cmpf ogt, %1, %88 : vector<8x1xf32>
    %cst_19 = arith.constant 1.000000e+00 : f32
    %cst_20 = arith.constant 0.000000e+00 : f32
    %90 = vector.broadcast %cst_19 : f32 to vector<8x1xf32>
    %91 = vector.broadcast %cst_20 : f32 to vector<8x1xf32>
    %92 = arith.select %89, %90, %91 : vector<8x1xi1>, vector<8x1xf32>
    %cst_21 = arith.constant 0.000000e+00 : f32
    %93 = vector.broadcast %cst_21 : f32 to vector<8x1xf32>
    %c0_i32_22 = arith.constant 0 : i32
    %cst_23 = arith.constant 5.000000e-01 : f32
    %94 = vector.broadcast %cst_23 : f32 to vector<8x1xf32>
    %95 = arith.cmpf ogt, %92, %94 : vector<8x1xf32>
    %cst_24 = arith.constant -1.000000e+30 : f32
    %96 = vector.broadcast %cst_24 : f32 to vector<8x1xf32>
    %97 = arith.select %95, %1, %96 : vector<8x1xi1>, vector<8x1xf32>
    %cst_25 = arith.constant dense<0xFF800000> : vector<1xf32>
    %98 = vector.multi_reduction <maximumf>, %97, %cst_25 [0] : vector<8x1xf32> to vector<1xf32>
    %99 = vector.shape_cast %98 : vector<1xf32> to vector<1x1xf32>
    %100 = vector.broadcast %99 : vector<1x1xf32> to vector<8x1xf32>
    %101 = arith.cmpf oeq, %97, %100 : vector<8x1xf32>
    %cst_26 = arith.constant 8.000000e+00 : f32
    %102 = vector.broadcast %cst_26 : f32 to vector<8x1xf32>
    %103 = arith.select %101, %86, %102 : vector<8x1xi1>, vector<8x1xf32>
    %cst_27 = arith.constant dense<0x7F800000> : vector<1xf32>
    %104 = vector.multi_reduction <minimumf>, %103, %cst_27 [0] : vector<8x1xf32> to vector<1xf32>
    %105 = vector.shape_cast %104 : vector<1xf32> to vector<1x1xf32>
    %106 = vector.broadcast %105 : vector<1x1xf32> to vector<8x1xf32>
    %107 = arith.cmpf oeq, %86, %106 : vector<8x1xf32>
    %108 = arith.extui %107 : vector<8x1xi1> to vector<8x1xi32>
    %109 = arith.sitofp %108 : vector<8x1xi32> to vector<8x1xf32>
    %110 = arith.mulf %109, %92 : vector<8x1xf32>
    %111 = arith.maximumf %93, %110 : vector<8x1xf32>
    %112 = vector.broadcast %105 : vector<1x1xf32> to vector<8x8xf32>
    %113 = arith.cmpf oeq, %87, %112 : vector<8x8xf32>
    %cst_28 = arith.constant 0.000000e+00 : f32
    %114 = vector.broadcast %cst_28 : f32 to vector<8x8xf32>
    %115 = arith.select %113, %84, %114 : vector<8x8xi1>, vector<8x8xf32>
    %cst_29 = arith.constant dense<0.000000e+00> : vector<8xf32>
    %116 = vector.multi_reduction <add>, %115, %cst_29 [1] : vector<8x8xf32> to vector<8xf32>
    %117 = vector.shape_cast %116 : vector<8xf32> to vector<8x1xf32>
    %cst_30 = arith.constant 1.000000e-01 : f32
    %118 = vector.broadcast %cst_30 : f32 to vector<8x1xf32>
    %119 = arith.cmpf ogt, %117, %118 : vector<8x1xf32>
    %120 = vector.broadcast %105 : vector<1x1xf32> to vector<8x1xf32>
    %121 = arith.cmpf oeq, %86, %120 : vector<8x1xf32>
    %122 = arith.ori %119, %121 : vector<8x1xi1>
    %cst_31 = arith.constant 1.000000e+00 : f32
    %cst_32 = arith.constant 0.000000e+00 : f32
    %123 = vector.broadcast %cst_31 : f32 to vector<8x1xf32>
    %124 = vector.broadcast %cst_32 : f32 to vector<8x1xf32>
    %125 = arith.select %122, %123, %124 : vector<8x1xi1>, vector<8x1xf32>
    %cst_33 = arith.constant 1.000000e+00 : f32
    %126 = vector.broadcast %cst_33 : f32 to vector<8x1xf32>
    %127 = arith.subf %126, %125 : vector<8x1xf32>
    %128 = arith.mulf %92, %127 : vector<8x1xf32>
    %c1_i32_34 = arith.constant 1 : i32
    %cst_35 = arith.constant 5.000000e-01 : f32
    %129 = vector.broadcast %cst_35 : f32 to vector<8x1xf32>
    %130 = arith.cmpf ogt, %128, %129 : vector<8x1xf32>
    %cst_36 = arith.constant -1.000000e+30 : f32
    %131 = vector.broadcast %cst_36 : f32 to vector<8x1xf32>
    %132 = arith.select %130, %1, %131 : vector<8x1xi1>, vector<8x1xf32>
    %cst_37 = arith.constant dense<0xFF800000> : vector<1xf32>
    %133 = vector.multi_reduction <maximumf>, %132, %cst_37 [0] : vector<8x1xf32> to vector<1xf32>
    %134 = vector.shape_cast %133 : vector<1xf32> to vector<1x1xf32>
    %135 = vector.broadcast %134 : vector<1x1xf32> to vector<8x1xf32>
    %136 = arith.cmpf oeq, %132, %135 : vector<8x1xf32>
    %cst_38 = arith.constant 8.000000e+00 : f32
    %137 = vector.broadcast %cst_38 : f32 to vector<8x1xf32>
    %138 = arith.select %136, %86, %137 : vector<8x1xi1>, vector<8x1xf32>
    %cst_39 = arith.constant dense<0x7F800000> : vector<1xf32>
    %139 = vector.multi_reduction <minimumf>, %138, %cst_39 [0] : vector<8x1xf32> to vector<1xf32>
    %140 = vector.shape_cast %139 : vector<1xf32> to vector<1x1xf32>
    %141 = vector.broadcast %140 : vector<1x1xf32> to vector<8x1xf32>
    %142 = arith.cmpf oeq, %86, %141 : vector<8x1xf32>
    %143 = arith.extui %142 : vector<8x1xi1> to vector<8x1xi32>
    %144 = arith.sitofp %143 : vector<8x1xi32> to vector<8x1xf32>
    %145 = arith.mulf %144, %128 : vector<8x1xf32>
    %146 = arith.maximumf %111, %145 : vector<8x1xf32>
    %147 = vector.broadcast %140 : vector<1x1xf32> to vector<8x8xf32>
    %148 = arith.cmpf oeq, %87, %147 : vector<8x8xf32>
    %cst_40 = arith.constant 0.000000e+00 : f32
    %149 = vector.broadcast %cst_40 : f32 to vector<8x8xf32>
    %150 = arith.select %148, %84, %149 : vector<8x8xi1>, vector<8x8xf32>
    %cst_41 = arith.constant dense<0.000000e+00> : vector<8xf32>
    %151 = vector.multi_reduction <add>, %150, %cst_41 [1] : vector<8x8xf32> to vector<8xf32>
    %152 = vector.shape_cast %151 : vector<8xf32> to vector<8x1xf32>
    %cst_42 = arith.constant 1.000000e-01 : f32
    %153 = vector.broadcast %cst_42 : f32 to vector<8x1xf32>
    %154 = arith.cmpf ogt, %152, %153 : vector<8x1xf32>
    %155 = vector.broadcast %140 : vector<1x1xf32> to vector<8x1xf32>
    %156 = arith.cmpf oeq, %86, %155 : vector<8x1xf32>
    %157 = arith.ori %154, %156 : vector<8x1xi1>
    %cst_43 = arith.constant 1.000000e+00 : f32
    %cst_44 = arith.constant 0.000000e+00 : f32
    %158 = vector.broadcast %cst_43 : f32 to vector<8x1xf32>
    %159 = vector.broadcast %cst_44 : f32 to vector<8x1xf32>
    %160 = arith.select %157, %158, %159 : vector<8x1xi1>, vector<8x1xf32>
    %cst_45 = arith.constant 1.000000e+00 : f32
    %161 = vector.broadcast %cst_45 : f32 to vector<8x1xf32>
    %162 = arith.subf %161, %160 : vector<8x1xf32>
    %163 = arith.mulf %128, %162 : vector<8x1xf32>
    %c2_i32 = arith.constant 2 : i32
    %cst_46 = arith.constant 5.000000e-01 : f32
    %164 = vector.broadcast %cst_46 : f32 to vector<8x1xf32>
    %165 = arith.cmpf ogt, %163, %164 : vector<8x1xf32>
    %cst_47 = arith.constant -1.000000e+30 : f32
    %166 = vector.broadcast %cst_47 : f32 to vector<8x1xf32>
    %167 = arith.select %165, %1, %166 : vector<8x1xi1>, vector<8x1xf32>
    %cst_48 = arith.constant dense<0xFF800000> : vector<1xf32>
    %168 = vector.multi_reduction <maximumf>, %167, %cst_48 [0] : vector<8x1xf32> to vector<1xf32>
    %169 = vector.shape_cast %168 : vector<1xf32> to vector<1x1xf32>
    %170 = vector.broadcast %169 : vector<1x1xf32> to vector<8x1xf32>
    %171 = arith.cmpf oeq, %167, %170 : vector<8x1xf32>
    %cst_49 = arith.constant 8.000000e+00 : f32
    %172 = vector.broadcast %cst_49 : f32 to vector<8x1xf32>
    %173 = arith.select %171, %86, %172 : vector<8x1xi1>, vector<8x1xf32>
    %cst_50 = arith.constant dense<0x7F800000> : vector<1xf32>
    %174 = vector.multi_reduction <minimumf>, %173, %cst_50 [0] : vector<8x1xf32> to vector<1xf32>
    %175 = vector.shape_cast %174 : vector<1xf32> to vector<1x1xf32>
    %176 = vector.broadcast %175 : vector<1x1xf32> to vector<8x1xf32>
    %177 = arith.cmpf oeq, %86, %176 : vector<8x1xf32>
    %178 = arith.extui %177 : vector<8x1xi1> to vector<8x1xi32>
    %179 = arith.sitofp %178 : vector<8x1xi32> to vector<8x1xf32>
    %180 = arith.mulf %179, %163 : vector<8x1xf32>
    %181 = arith.maximumf %146, %180 : vector<8x1xf32>
    %182 = vector.broadcast %175 : vector<1x1xf32> to vector<8x8xf32>
    %183 = arith.cmpf oeq, %87, %182 : vector<8x8xf32>
    %cst_51 = arith.constant 0.000000e+00 : f32
    %184 = vector.broadcast %cst_51 : f32 to vector<8x8xf32>
    %185 = arith.select %183, %84, %184 : vector<8x8xi1>, vector<8x8xf32>
    %cst_52 = arith.constant dense<0.000000e+00> : vector<8xf32>
    %186 = vector.multi_reduction <add>, %185, %cst_52 [1] : vector<8x8xf32> to vector<8xf32>
    %187 = vector.shape_cast %186 : vector<8xf32> to vector<8x1xf32>
    %cst_53 = arith.constant 1.000000e-01 : f32
    %188 = vector.broadcast %cst_53 : f32 to vector<8x1xf32>
    %189 = arith.cmpf ogt, %187, %188 : vector<8x1xf32>
    %190 = vector.broadcast %175 : vector<1x1xf32> to vector<8x1xf32>
    %191 = arith.cmpf oeq, %86, %190 : vector<8x1xf32>
    %192 = arith.ori %189, %191 : vector<8x1xi1>
    %cst_54 = arith.constant 1.000000e+00 : f32
    %cst_55 = arith.constant 0.000000e+00 : f32
    %193 = vector.broadcast %cst_54 : f32 to vector<8x1xf32>
    %194 = vector.broadcast %cst_55 : f32 to vector<8x1xf32>
    %195 = arith.select %192, %193, %194 : vector<8x1xi1>, vector<8x1xf32>
    %cst_56 = arith.constant 1.000000e+00 : f32
    %196 = vector.broadcast %cst_56 : f32 to vector<8x1xf32>
    %197 = arith.subf %196, %195 : vector<8x1xf32>
    %198 = arith.mulf %163, %197 : vector<8x1xf32>
    %c3_i32 = arith.constant 3 : i32
    %cst_57 = arith.constant 5.000000e-01 : f32
    %199 = vector.broadcast %cst_57 : f32 to vector<8x1xf32>
    %200 = arith.cmpf ogt, %198, %199 : vector<8x1xf32>
    %cst_58 = arith.constant -1.000000e+30 : f32
    %201 = vector.broadcast %cst_58 : f32 to vector<8x1xf32>
    %202 = arith.select %200, %1, %201 : vector<8x1xi1>, vector<8x1xf32>
    %cst_59 = arith.constant dense<0xFF800000> : vector<1xf32>
    %203 = vector.multi_reduction <maximumf>, %202, %cst_59 [0] : vector<8x1xf32> to vector<1xf32>
    %204 = vector.shape_cast %203 : vector<1xf32> to vector<1x1xf32>
    %205 = vector.broadcast %204 : vector<1x1xf32> to vector<8x1xf32>
    %206 = arith.cmpf oeq, %202, %205 : vector<8x1xf32>
    %cst_60 = arith.constant 8.000000e+00 : f32
    %207 = vector.broadcast %cst_60 : f32 to vector<8x1xf32>
    %208 = arith.select %206, %86, %207 : vector<8x1xi1>, vector<8x1xf32>
    %cst_61 = arith.constant dense<0x7F800000> : vector<1xf32>
    %209 = vector.multi_reduction <minimumf>, %208, %cst_61 [0] : vector<8x1xf32> to vector<1xf32>
    %210 = vector.shape_cast %209 : vector<1xf32> to vector<1x1xf32>
    %211 = vector.broadcast %210 : vector<1x1xf32> to vector<8x1xf32>
    %212 = arith.cmpf oeq, %86, %211 : vector<8x1xf32>
    %213 = arith.extui %212 : vector<8x1xi1> to vector<8x1xi32>
    %214 = arith.sitofp %213 : vector<8x1xi32> to vector<8x1xf32>
    %215 = arith.mulf %214, %198 : vector<8x1xf32>
    %216 = arith.maximumf %181, %215 : vector<8x1xf32>
    %217 = vector.broadcast %210 : vector<1x1xf32> to vector<8x8xf32>
    %218 = arith.cmpf oeq, %87, %217 : vector<8x8xf32>
    %cst_62 = arith.constant 0.000000e+00 : f32
    %219 = vector.broadcast %cst_62 : f32 to vector<8x8xf32>
    %220 = arith.select %218, %84, %219 : vector<8x8xi1>, vector<8x8xf32>
    %cst_63 = arith.constant dense<0.000000e+00> : vector<8xf32>
    %221 = vector.multi_reduction <add>, %220, %cst_63 [1] : vector<8x8xf32> to vector<8xf32>
    %222 = vector.shape_cast %221 : vector<8xf32> to vector<8x1xf32>
    %cst_64 = arith.constant 1.000000e-01 : f32
    %223 = vector.broadcast %cst_64 : f32 to vector<8x1xf32>
    %224 = arith.cmpf ogt, %222, %223 : vector<8x1xf32>
    %225 = vector.broadcast %210 : vector<1x1xf32> to vector<8x1xf32>
    %226 = arith.cmpf oeq, %86, %225 : vector<8x1xf32>
    %227 = arith.ori %224, %226 : vector<8x1xi1>
    %cst_65 = arith.constant 1.000000e+00 : f32
    %cst_66 = arith.constant 0.000000e+00 : f32
    %228 = vector.broadcast %cst_65 : f32 to vector<8x1xf32>
    %229 = vector.broadcast %cst_66 : f32 to vector<8x1xf32>
    %230 = arith.select %227, %228, %229 : vector<8x1xi1>, vector<8x1xf32>
    %cst_67 = arith.constant 1.000000e+00 : f32
    %231 = vector.broadcast %cst_67 : f32 to vector<8x1xf32>
    %232 = arith.subf %231, %230 : vector<8x1xf32>
    %233 = arith.mulf %198, %232 : vector<8x1xf32>
    %c4_i32 = arith.constant 4 : i32
    %cst_68 = arith.constant 5.000000e-01 : f32
    %234 = vector.broadcast %cst_68 : f32 to vector<8x1xf32>
    %235 = arith.cmpf ogt, %233, %234 : vector<8x1xf32>
    %cst_69 = arith.constant -1.000000e+30 : f32
    %236 = vector.broadcast %cst_69 : f32 to vector<8x1xf32>
    %237 = arith.select %235, %1, %236 : vector<8x1xi1>, vector<8x1xf32>
    %cst_70 = arith.constant dense<0xFF800000> : vector<1xf32>
    %238 = vector.multi_reduction <maximumf>, %237, %cst_70 [0] : vector<8x1xf32> to vector<1xf32>
    %239 = vector.shape_cast %238 : vector<1xf32> to vector<1x1xf32>
    %240 = vector.broadcast %239 : vector<1x1xf32> to vector<8x1xf32>
    %241 = arith.cmpf oeq, %237, %240 : vector<8x1xf32>
    %cst_71 = arith.constant 8.000000e+00 : f32
    %242 = vector.broadcast %cst_71 : f32 to vector<8x1xf32>
    %243 = arith.select %241, %86, %242 : vector<8x1xi1>, vector<8x1xf32>
    %cst_72 = arith.constant dense<0x7F800000> : vector<1xf32>
    %244 = vector.multi_reduction <minimumf>, %243, %cst_72 [0] : vector<8x1xf32> to vector<1xf32>
    %245 = vector.shape_cast %244 : vector<1xf32> to vector<1x1xf32>
    %246 = vector.broadcast %245 : vector<1x1xf32> to vector<8x1xf32>
    %247 = arith.cmpf oeq, %86, %246 : vector<8x1xf32>
    %248 = arith.extui %247 : vector<8x1xi1> to vector<8x1xi32>
    %249 = arith.sitofp %248 : vector<8x1xi32> to vector<8x1xf32>
    %250 = arith.mulf %249, %233 : vector<8x1xf32>
    %251 = arith.maximumf %216, %250 : vector<8x1xf32>
    %252 = vector.broadcast %245 : vector<1x1xf32> to vector<8x8xf32>
    %253 = arith.cmpf oeq, %87, %252 : vector<8x8xf32>
    %cst_73 = arith.constant 0.000000e+00 : f32
    %254 = vector.broadcast %cst_73 : f32 to vector<8x8xf32>
    %255 = arith.select %253, %84, %254 : vector<8x8xi1>, vector<8x8xf32>
    %cst_74 = arith.constant dense<0.000000e+00> : vector<8xf32>
    %256 = vector.multi_reduction <add>, %255, %cst_74 [1] : vector<8x8xf32> to vector<8xf32>
    %257 = vector.shape_cast %256 : vector<8xf32> to vector<8x1xf32>
    %cst_75 = arith.constant 1.000000e-01 : f32
    %258 = vector.broadcast %cst_75 : f32 to vector<8x1xf32>
    %259 = arith.cmpf ogt, %257, %258 : vector<8x1xf32>
    %260 = vector.broadcast %245 : vector<1x1xf32> to vector<8x1xf32>
    %261 = arith.cmpf oeq, %86, %260 : vector<8x1xf32>
    %262 = arith.ori %259, %261 : vector<8x1xi1>
    %cst_76 = arith.constant 1.000000e+00 : f32
    %cst_77 = arith.constant 0.000000e+00 : f32
    %263 = vector.broadcast %cst_76 : f32 to vector<8x1xf32>
    %264 = vector.broadcast %cst_77 : f32 to vector<8x1xf32>
    %265 = arith.select %262, %263, %264 : vector<8x1xi1>, vector<8x1xf32>
    %cst_78 = arith.constant 1.000000e+00 : f32
    %266 = vector.broadcast %cst_78 : f32 to vector<8x1xf32>
    %267 = arith.subf %266, %265 : vector<8x1xf32>
    %268 = arith.mulf %233, %267 : vector<8x1xf32>
    %c5_i32 = arith.constant 5 : i32
    %cst_79 = arith.constant 5.000000e-01 : f32
    %269 = vector.broadcast %cst_79 : f32 to vector<8x1xf32>
    %270 = arith.cmpf ogt, %268, %269 : vector<8x1xf32>
    %cst_80 = arith.constant -1.000000e+30 : f32
    %271 = vector.broadcast %cst_80 : f32 to vector<8x1xf32>
    %272 = arith.select %270, %1, %271 : vector<8x1xi1>, vector<8x1xf32>
    %cst_81 = arith.constant dense<0xFF800000> : vector<1xf32>
    %273 = vector.multi_reduction <maximumf>, %272, %cst_81 [0] : vector<8x1xf32> to vector<1xf32>
    %274 = vector.shape_cast %273 : vector<1xf32> to vector<1x1xf32>
    %275 = vector.broadcast %274 : vector<1x1xf32> to vector<8x1xf32>
    %276 = arith.cmpf oeq, %272, %275 : vector<8x1xf32>
    %cst_82 = arith.constant 8.000000e+00 : f32
    %277 = vector.broadcast %cst_82 : f32 to vector<8x1xf32>
    %278 = arith.select %276, %86, %277 : vector<8x1xi1>, vector<8x1xf32>
    %cst_83 = arith.constant dense<0x7F800000> : vector<1xf32>
    %279 = vector.multi_reduction <minimumf>, %278, %cst_83 [0] : vector<8x1xf32> to vector<1xf32>
    %280 = vector.shape_cast %279 : vector<1xf32> to vector<1x1xf32>
    %281 = vector.broadcast %280 : vector<1x1xf32> to vector<8x1xf32>
    %282 = arith.cmpf oeq, %86, %281 : vector<8x1xf32>
    %283 = arith.extui %282 : vector<8x1xi1> to vector<8x1xi32>
    %284 = arith.sitofp %283 : vector<8x1xi32> to vector<8x1xf32>
    %285 = arith.mulf %284, %268 : vector<8x1xf32>
    %286 = arith.maximumf %251, %285 : vector<8x1xf32>
    %287 = vector.broadcast %280 : vector<1x1xf32> to vector<8x8xf32>
    %288 = arith.cmpf oeq, %87, %287 : vector<8x8xf32>
    %cst_84 = arith.constant 0.000000e+00 : f32
    %289 = vector.broadcast %cst_84 : f32 to vector<8x8xf32>
    %290 = arith.select %288, %84, %289 : vector<8x8xi1>, vector<8x8xf32>
    %cst_85 = arith.constant dense<0.000000e+00> : vector<8xf32>
    %291 = vector.multi_reduction <add>, %290, %cst_85 [1] : vector<8x8xf32> to vector<8xf32>
    %292 = vector.shape_cast %291 : vector<8xf32> to vector<8x1xf32>
    %cst_86 = arith.constant 1.000000e-01 : f32
    %293 = vector.broadcast %cst_86 : f32 to vector<8x1xf32>
    %294 = arith.cmpf ogt, %292, %293 : vector<8x1xf32>
    %295 = vector.broadcast %280 : vector<1x1xf32> to vector<8x1xf32>
    %296 = arith.cmpf oeq, %86, %295 : vector<8x1xf32>
    %297 = arith.ori %294, %296 : vector<8x1xi1>
    %cst_87 = arith.constant 1.000000e+00 : f32
    %cst_88 = arith.constant 0.000000e+00 : f32
    %298 = vector.broadcast %cst_87 : f32 to vector<8x1xf32>
    %299 = vector.broadcast %cst_88 : f32 to vector<8x1xf32>
    %300 = arith.select %297, %298, %299 : vector<8x1xi1>, vector<8x1xf32>
    %cst_89 = arith.constant 1.000000e+00 : f32
    %301 = vector.broadcast %cst_89 : f32 to vector<8x1xf32>
    %302 = arith.subf %301, %300 : vector<8x1xf32>
    %303 = arith.mulf %268, %302 : vector<8x1xf32>
    %c6_i32 = arith.constant 6 : i32
    %cst_90 = arith.constant 5.000000e-01 : f32
    %304 = vector.broadcast %cst_90 : f32 to vector<8x1xf32>
    %305 = arith.cmpf ogt, %303, %304 : vector<8x1xf32>
    %cst_91 = arith.constant -1.000000e+30 : f32
    %306 = vector.broadcast %cst_91 : f32 to vector<8x1xf32>
    %307 = arith.select %305, %1, %306 : vector<8x1xi1>, vector<8x1xf32>
    %cst_92 = arith.constant dense<0xFF800000> : vector<1xf32>
    %308 = vector.multi_reduction <maximumf>, %307, %cst_92 [0] : vector<8x1xf32> to vector<1xf32>
    %309 = vector.shape_cast %308 : vector<1xf32> to vector<1x1xf32>
    %310 = vector.broadcast %309 : vector<1x1xf32> to vector<8x1xf32>
    %311 = arith.cmpf oeq, %307, %310 : vector<8x1xf32>
    %cst_93 = arith.constant 8.000000e+00 : f32
    %312 = vector.broadcast %cst_93 : f32 to vector<8x1xf32>
    %313 = arith.select %311, %86, %312 : vector<8x1xi1>, vector<8x1xf32>
    %cst_94 = arith.constant dense<0x7F800000> : vector<1xf32>
    %314 = vector.multi_reduction <minimumf>, %313, %cst_94 [0] : vector<8x1xf32> to vector<1xf32>
    %315 = vector.shape_cast %314 : vector<1xf32> to vector<1x1xf32>
    %316 = vector.broadcast %315 : vector<1x1xf32> to vector<8x1xf32>
    %317 = arith.cmpf oeq, %86, %316 : vector<8x1xf32>
    %318 = arith.extui %317 : vector<8x1xi1> to vector<8x1xi32>
    %319 = arith.sitofp %318 : vector<8x1xi32> to vector<8x1xf32>
    %320 = arith.mulf %319, %303 : vector<8x1xf32>
    %321 = arith.maximumf %286, %320 : vector<8x1xf32>
    %322 = vector.broadcast %315 : vector<1x1xf32> to vector<8x8xf32>
    %323 = arith.cmpf oeq, %87, %322 : vector<8x8xf32>
    %cst_95 = arith.constant 0.000000e+00 : f32
    %324 = vector.broadcast %cst_95 : f32 to vector<8x8xf32>
    %325 = arith.select %323, %84, %324 : vector<8x8xi1>, vector<8x8xf32>
    %cst_96 = arith.constant dense<0.000000e+00> : vector<8xf32>
    %326 = vector.multi_reduction <add>, %325, %cst_96 [1] : vector<8x8xf32> to vector<8xf32>
    %327 = vector.shape_cast %326 : vector<8xf32> to vector<8x1xf32>
    %cst_97 = arith.constant 1.000000e-01 : f32
    %328 = vector.broadcast %cst_97 : f32 to vector<8x1xf32>
    %329 = arith.cmpf ogt, %327, %328 : vector<8x1xf32>
    %330 = vector.broadcast %315 : vector<1x1xf32> to vector<8x1xf32>
    %331 = arith.cmpf oeq, %86, %330 : vector<8x1xf32>
    %332 = arith.ori %329, %331 : vector<8x1xi1>
    %cst_98 = arith.constant 1.000000e+00 : f32
    %cst_99 = arith.constant 0.000000e+00 : f32
    %333 = vector.broadcast %cst_98 : f32 to vector<8x1xf32>
    %334 = vector.broadcast %cst_99 : f32 to vector<8x1xf32>
    %335 = arith.select %332, %333, %334 : vector<8x1xi1>, vector<8x1xf32>
    %cst_100 = arith.constant 1.000000e+00 : f32
    %336 = vector.broadcast %cst_100 : f32 to vector<8x1xf32>
    %337 = arith.subf %336, %335 : vector<8x1xf32>
    %338 = arith.mulf %303, %337 : vector<8x1xf32>
    %c7_i32 = arith.constant 7 : i32
    %cst_101 = arith.constant 5.000000e-01 : f32
    %339 = vector.broadcast %cst_101 : f32 to vector<8x1xf32>
    %340 = arith.cmpf ogt, %338, %339 : vector<8x1xf32>
    %cst_102 = arith.constant -1.000000e+30 : f32
    %341 = vector.broadcast %cst_102 : f32 to vector<8x1xf32>
    %342 = arith.select %340, %1, %341 : vector<8x1xi1>, vector<8x1xf32>
    %cst_103 = arith.constant dense<0xFF800000> : vector<1xf32>
    %343 = vector.multi_reduction <maximumf>, %342, %cst_103 [0] : vector<8x1xf32> to vector<1xf32>
    %344 = vector.shape_cast %343 : vector<1xf32> to vector<1x1xf32>
    %345 = vector.broadcast %344 : vector<1x1xf32> to vector<8x1xf32>
    %346 = arith.cmpf oeq, %342, %345 : vector<8x1xf32>
    %cst_104 = arith.constant 8.000000e+00 : f32
    %347 = vector.broadcast %cst_104 : f32 to vector<8x1xf32>
    %348 = arith.select %346, %86, %347 : vector<8x1xi1>, vector<8x1xf32>
    %cst_105 = arith.constant dense<0x7F800000> : vector<1xf32>
    %349 = vector.multi_reduction <minimumf>, %348, %cst_105 [0] : vector<8x1xf32> to vector<1xf32>
    %350 = vector.shape_cast %349 : vector<1xf32> to vector<1x1xf32>
    %351 = vector.broadcast %350 : vector<1x1xf32> to vector<8x1xf32>
    %352 = arith.cmpf oeq, %86, %351 : vector<8x1xf32>
    %353 = arith.extui %352 : vector<8x1xi1> to vector<8x1xi32>
    %354 = arith.sitofp %353 : vector<8x1xi32> to vector<8x1xf32>
    %355 = arith.mulf %354, %338 : vector<8x1xf32>
    %356 = arith.maximumf %321, %355 : vector<8x1xf32>
    %357 = vector.broadcast %350 : vector<1x1xf32> to vector<8x8xf32>
    %358 = arith.cmpf oeq, %87, %357 : vector<8x8xf32>
    %cst_106 = arith.constant 0.000000e+00 : f32
    %359 = vector.broadcast %cst_106 : f32 to vector<8x8xf32>
    %360 = arith.select %358, %84, %359 : vector<8x8xi1>, vector<8x8xf32>
    %cst_107 = arith.constant dense<0.000000e+00> : vector<8xf32>
    %361 = vector.multi_reduction <add>, %360, %cst_107 [1] : vector<8x8xf32> to vector<8xf32>
    %362 = vector.shape_cast %361 : vector<8xf32> to vector<8x1xf32>
    %cst_108 = arith.constant 1.000000e-01 : f32
    %363 = vector.broadcast %cst_108 : f32 to vector<8x1xf32>
    %364 = arith.cmpf ogt, %362, %363 : vector<8x1xf32>
    %365 = vector.broadcast %350 : vector<1x1xf32> to vector<8x1xf32>
    %366 = arith.cmpf oeq, %86, %365 : vector<8x1xf32>
    %367 = arith.ori %364, %366 : vector<8x1xi1>
    %cst_109 = arith.constant 1.000000e+00 : f32
    %cst_110 = arith.constant 0.000000e+00 : f32
    %368 = vector.broadcast %cst_109 : f32 to vector<8x1xf32>
    %369 = vector.broadcast %cst_110 : f32 to vector<8x1xf32>
    %370 = arith.select %367, %368, %369 : vector<8x1xi1>, vector<8x1xf32>
    %cst_111 = arith.constant 1.000000e+00 : f32
    %371 = vector.broadcast %cst_111 : f32 to vector<8x1xf32>
    %372 = arith.subf %371, %370 : vector<8x1xf32>
    %373 = arith.mulf %338, %372 : vector<8x1xf32>
    %c0_112 = arith.constant 0 : index
    %c0_113 = arith.constant 0 : index
    %374 = vector.load %arg2[%c0_112, %c0_113] : memref<8x1024xf32, #tpu.memory_space<vmem>>, vector<8x1024xf32>
    %c0_114 = arith.constant 0 : index
    %c0_115 = arith.constant 0 : index
    %375 = vector.load %arg4[%c0_114, %c0_115] : memref<1024x128xf32, #tpu.memory_space<vmem>>, vector<1024x128xf32>
    %cst_116 = arith.constant dense<0.000000e+00> : vector<8x128xf32>
    %376 = tpu.matmul %374, %375, %cst_116 {dimension_numbers = #tpu.dot_dimension_numbers<[1], [0], [0], [1], [0, 0, 1, 1], [], []>} : vector<8x1024xf32>, vector<1024x128xf32>, vector<8x128xf32> -> vector<8x128xf32>
    %c0_117 = arith.constant 0 : index
    %c0_118 = arith.constant 0 : index
    %377 = vector.load %arg5[%c0_117, %c0_118] : memref<1x128xf32, #tpu.memory_space<vmem>>, vector<1x128xf32>
    %378 = vector.broadcast %377 : vector<1x128xf32> to vector<8x128xf32>
    %379 = arith.addf %376, %378 : vector<8x128xf32>
    %cst_119 = arith.constant 0.000000e+00 : f32
    %380 = vector.broadcast %cst_119 : f32 to vector<8x128xf32>
    %381 = arith.maximumf %379, %380 : vector<8x128xf32>
    %c0_120 = arith.constant 0 : index
    %c0_121 = arith.constant 0 : index
    %382 = vector.load %arg6[%c0_120, %c0_121] : memref<128x128xf32, #tpu.memory_space<vmem>>, vector<128x128xf32>
    %cst_122 = arith.constant dense<0.000000e+00> : vector<8x128xf32>
    %383 = tpu.matmul %381, %382, %cst_122 {dimension_numbers = #tpu.dot_dimension_numbers<[1], [0], [0], [1], [0, 0, 1, 1], [], []>} : vector<8x128xf32>, vector<128x128xf32>, vector<8x128xf32> -> vector<8x128xf32>
    %c0_123 = arith.constant 0 : index
    %c0_124 = arith.constant 0 : index
    %384 = vector.load %arg7[%c0_123, %c0_124] : memref<1x128xf32, #tpu.memory_space<vmem>>, vector<1x128xf32>
    %385 = vector.broadcast %384 : vector<1x128xf32> to vector<8x128xf32>
    %386 = arith.addf %383, %385 : vector<8x128xf32>
    %cst_125 = arith.constant dense<0xFF800000> : vector<8xf32>
    %387 = vector.multi_reduction <maximumf>, %386, %cst_125 [1] : vector<8x128xf32> to vector<8xf32>
    %388 = vector.shape_cast %387 : vector<8xf32> to vector<8x1xf32>
    %389 = vector.broadcast %388 : vector<8x1xf32> to vector<8x128xf32>
    %390 = arith.subf %386, %389 : vector<8x128xf32>
    %391 = math.exp %390 : vector<8x128xf32>
    %cst_126 = arith.constant dense<0.000000e+00> : vector<8xf32>
    %392 = vector.multi_reduction <add>, %391, %cst_126 [1] : vector<8x128xf32> to vector<8xf32>
    %393 = vector.shape_cast %392 : vector<8xf32> to vector<8x1xf32>
    %394 = tpu.reciprocal %393 {approx = true} : vector<8x1xf32> -> vector<8x1xf32>
    %395 = vector.broadcast %394 : vector<8x1xf32> to vector<8x128xf32>
    %396 = arith.mulf %391, %395 : vector<8x128xf32>
    %c0_127 = arith.constant 0 : index
    %c0_128 = arith.constant 0 : index
    %397 = vector.load %arg8[%c0_127, %c0_128] : memref<8x128xf32, #tpu.memory_space<vmem>>, vector<8x128xf32>
    tpu.vector_store %arg8[%c0_127, %c0_128], %396 {strides = array<i32>} : memref<8x128xf32, #tpu.memory_space<vmem>>, vector<8x128xf32>,
    %398 = tpu.iota {dimensions = array<i32: 1>} : vector<8x128xi32>
    %399 = arith.sitofp %398 : vector<8x128xi32> to vector<8x128xf32>
    %400 = vector.broadcast %388 : vector<8x1xf32> to vector<8x128xf32>
    %401 = arith.cmpf oeq, %386, %400 : vector<8x128xf32>
    %cst_129 = arith.constant 1.280000e+02 : f32
    %402 = vector.broadcast %cst_129 : f32 to vector<8x128xf32>
    %403 = arith.select %401, %399, %402 : vector<8x128xi1>, vector<8x128xf32>
    %cst_130 = arith.constant dense<0x7F800000> : vector<8xf32>
    %404 = vector.multi_reduction <minimumf>, %403, %cst_130 [1] : vector<8x128xf32> to vector<8xf32>
    %405 = vector.shape_cast %404 : vector<8xf32> to vector<8x1xf32>
    %cst_131 = arith.constant dense<0xFF800000> : vector<8xf32>
    %406 = vector.multi_reduction <maximumf>, %396, %cst_131 [1] : vector<8x128xf32> to vector<8xf32>
    %407 = vector.shape_cast %406 : vector<8xf32> to vector<8x1xf32>
    %cst_132 = arith.constant 0.000000e+00 : f32
    %408 = vector.broadcast %cst_132 : f32 to vector<8x128xf32>
    %c0_133 = arith.constant 0 : index
    %c0_134 = arith.constant 0 : index
    %409 = vector.load %arg9[%c0_133, %c0_134] : memref<8x128xf32, #tpu.memory_space<vmem>>, vector<8x128xf32>
    tpu.vector_store %arg9[%c0_133, %c0_134], %408 {strides = array<i32>} : memref<8x128xf32, #tpu.memory_space<vmem>>, vector<8x128xf32>,
    %c0_135 = arith.constant 0 : index
    %c0_136 = arith.constant 0 : index
    %410 = vector.load %arg9[%c0_135, %c0_136] : memref<8x128xf32, #tpu.memory_space<vmem>>, vector<8x4xf32>
    tpu.vector_store %arg9[%c0_135, %c0_136], %17 {strides = array<i32>} : memref<8x128xf32, #tpu.memory_space<vmem>>, vector<8x4xf32>,
    %c0_137 = arith.constant 0 : index
    %c4 = arith.constant 4 : index
    %411 = vector.load %arg9[%c0_137, %c4] : memref<8x128xf32, #tpu.memory_space<vmem>>, vector<8x1xf32>
    tpu.vector_store %arg9[%c0_137, %c4], %356 {strides = array<i32>} : memref<8x128xf32, #tpu.memory_space<vmem>>, vector<8x1xf32>,
    %c0_138 = arith.constant 0 : index
    %c5 = arith.constant 5 : index
    %412 = vector.load %arg9[%c0_138, %c5] : memref<8x128xf32, #tpu.memory_space<vmem>>, vector<8x1xf32>
    tpu.vector_store %arg9[%c0_138, %c5], %405 {strides = array<i32>} : memref<8x128xf32, #tpu.memory_space<vmem>>, vector<8x1xf32>,
    %c0_139 = arith.constant 0 : index
    %c6 = arith.constant 6 : index
    %413 = vector.load %arg9[%c0_139, %c6] : memref<8x128xf32, #tpu.memory_space<vmem>>, vector<8x1xf32>
    tpu.vector_store %arg9[%c0_139, %c6], %407 {strides = array<i32>} : memref<8x128xf32, #tpu.memory_space<vmem>>, vector<8x1xf32>,
    %c0_140 = arith.constant 0 : index
    %c7 = arith.constant 7 : index
    %414 = vector.load %arg9[%c0_140, %c7] : memref<8x128xf32, #tpu.memory_space<vmem>>, vector<8x1xf32>
    tpu.vector_store %arg9[%c0_140, %c7], %1 {strides = array<i32>} : memref<8x128xf32, #tpu.memory_space<vmem>>, vector<8x1xf32>,
    return
  }
}

</mosaic_0001>

<llo_original>
// kernel: tpu_custom_call.1
$region0: #{tpu_custom_call.1}
  #allocation0 [shape = 'u32[]', space=smem, size = 0x4, offset = 0x4, fixed_abs, tag = 'smem constant byte address 0x4 - core index']
  #allocation1 [shape = 'u32[72,128]{1,0:T(1,128)}', space=vmem, size = 0x9000, scoped, tag = 'internal scratch']
  %s0 = inlined_call_operand.vmem [shape: f32[8,4], index: 0, kind: input, shape index: {}]
  %s1 = inlined_call_operand.vmem [shape: f32[8,1], index: 1, kind: input, shape index: {}]
  %s2 = inlined_call_operand.hbm [shape: f32[8,1024], index: 2, kind: input, shape index: {}]
  %s3 = inlined_call_operand.vmem [shape: f32[2], index: 3, kind: input, shape index: {}]
  %s4 = inlined_call_operand.hbm [shape: f32[1024,128], index: 4, kind: input, shape index: {}]
  %s5 = inlined_call_operand.vmem [shape: f32[1,128], index: 5, kind: input, shape index: {}]
  %s6 = inlined_call_operand.hbm [shape: f32[128,128], index: 6, kind: input, shape index: {}]
  %s7 = inlined_call_operand.vmem [shape: f32[1,128], index: 7, kind: input, shape index: {}]
  %s8 = inlined_call_operand.hbm [shape: f32[8,128], index: 8, kind: output, shape index: {0}]
  %s9 = inlined_call_operand.hbm [shape: f32[8,128], index: 9, kind: output, shape index: {1}]
  %10 = xla_tuple %s8, %s9
  %s11 = sld [smem:[#allocation0]]
  $region66: #{tpu_custom_call.1} parent=0
    _
  %s13 = ssub.s32 1, %s11
  %s14 = scalar_select 0, %s13, %s11
  $region1: #{tpu_custom_call.1} parent=0
    #allocation2 [shape = 'u8[32768]{0}', space=vmem, size = 0x8000, scoped, tag = 'input window, operand 2, single buffered']
    #allocation3 [shape = 's32[1]{0}', space=sflag, size = 0x4, scoped, tag = 'scoped memory for tpu_custom_call.1']
    #allocation4 [shape = 's32[1]{0}', space=sflag, size = 0x4, scoped, tag = 'scoped memory for tpu_custom_call.1']
    #allocation5 [shape = 's32[1]{0}', space=sflag, size = 0x4, scoped, tag = 'scoped memory for tpu_custom_call.1']
    #allocation6 [shape = 'u8[512]{0}', space=smem, size = 0x200, scoped, tag = 'input window, operand 3, single buffered']
    #allocation7 [shape = 'u8[524288]{0}', space=vmem, size = 0x80000, scoped, tag = 'input window, operand 4, single buffered']
    #allocation8 [shape = 's32[1]{0}', space=sflag, size = 0x4, scoped, tag = 'scoped memory for tpu_custom_call.1']
    #allocation9 [shape = 'u8[65536]{0}', space=vmem, size = 0x10000, scoped, tag = 'input window, operand 6, single buffered']
    #allocation10 [shape = 'u8[4096]{0}', space=vmem, size = 0x1000, scoped, tag = 'output window, operand 0, single buffered']
    #allocation11 [shape = 'u8[4096]{0}', space=vmem, size = 0x1000, scoped, tag = 'output window, operand 1, single buffered']
    #allocation12 [shape = 's32[1]{0}', space=sflag, size = 0x4, scoped, tag = 'scoped memory for tpu_custom_call.1']
    %15 = vsyncpa [#allocation3], 0
    %16 = vsyncpa [#allocation5], 0
    %17 = vsyncpa [#allocation8], 0
    %18 = vsyncpa [#allocation4], 0
    %19 = vsyncpa [#allocation12], 0
    // Predicated region
    $region2: #{tpu_custom_call.1} parent=1 // pred_check
      _
    $region3: #{tpu_custom_call.1} parent=1 // pred_check_branch
      %21 = sbr.rel (0) target = $region5
    $region4: #{tpu_custom_call.1} parent=1 // pred_region
      _
    $region5: #{tpu_custom_call.1} parent=1 // pred_fallthru
      _
    // Predicated region
    $region6: #{tpu_custom_call.1} parent=1 // pred_check
      _
    $region7: #{tpu_custom_call.1} parent=1 // pred_check_branch
      %23 = sbr.rel (0) target = $region9
    $region8: #{tpu_custom_call.1} parent=1 // pred_region
      _
    $region9: #{tpu_custom_call.1} parent=1 // pred_fallthru
      _
    // Predicated region
    $region10: #{tpu_custom_call.1} parent=1 // pred_check
      _
    $region11: #{tpu_custom_call.1} parent=1 // pred_check_branch
      %25 = sbr.rel (0) target = $region13
    $region12: #{tpu_custom_call.1} parent=1 // pred_region
      %27 = vsyncadd [#allocation3], 0
      %s29 = sshll.u32 %s2, 4
      %s30 = int_to_ptr.hbm [resolvable:$true] %s29
      %s31 = sshll.u32 [#allocation2], 4
      %s32 = int_to_ptr.vmem [resolvable:$true] %s31
      %34 = dma.hbm_to_vmem [thread:$0]  %s30, 1024, %s32, [#allocation3]
    $region13: #{tpu_custom_call.1} parent=1 // pred_fallthru
      _
    // Predicated region
    $region14: #{tpu_custom_call.1} parent=1 // pred_check
      _
    $region15: #{tpu_custom_call.1} parent=1 // pred_check_branch
      %36 = sbr.rel (0) target = $region17
    $region16: #{tpu_custom_call.1} parent=1 // pred_region
      %38 = vsyncadd [#allocation5], 0
      %s40 = sshll.u32 %s3, 4
      %s41 = int_to_ptr.vmem [resolvable:$true] %s40
      %43 = dma.vmem_to_smem %s41, 16, [#allocation6], [#allocation5]
    $region17: #{tpu_custom_call.1} parent=1 // pred_fallthru
      _
    // Predicated region
    $region18: #{tpu_custom_call.1} parent=1 // pred_check
      _
    $region19: #{tpu_custom_call.1} parent=1 // pred_check_branch
      %45 = sbr.rel (0) target = $region21
    $region20: #{tpu_custom_call.1} parent=1 // pred_region
      %47 = vsyncadd [#allocation8], 0
      %s48 = sshll.u32 %s4, 4
      %s49 = int_to_ptr.hbm [resolvable:$true] %s48
      %s50 = sshll.u32 [#allocation7], 4
      %s51 = int_to_ptr.vmem [resolvable:$true] %s50
      %56 = dma.hbm_to_vmem [thread:$0]  %s49, 16384, %s51, [#allocation8], 128, 128, 8
    $region21: #{tpu_custom_call.1} parent=1 // pred_fallthru
      _
    // Predicated region
    $region22: #{tpu_custom_call.1} parent=1 // pred_check
      _
    $region23: #{tpu_custom_call.1} parent=1 // pred_check_branch
      %58 = sbr.rel (0) target = $region25
    $region24: #{tpu_custom_call.1} parent=1 // pred_region
      _
    $region25: #{tpu_custom_call.1} parent=1 // pred_fallthru
      _
    // Predicated region
    $region26: #{tpu_custom_call.1} parent=1 // pred_check
      _
    $region27: #{tpu_custom_call.1} parent=1 // pred_check_branch
      %60 = sbr.rel (0) target = $region29
    $region28: #{tpu_custom_call.1} parent=1 // pred_region
      %62 = vsyncadd [#allocation8], 0
      %s63 = sshll.u32 %s6, 4
      %s64 = int_to_ptr.hbm [resolvable:$true] %s63
      %s65 = sshll.u32 [#allocation9], 4
      %s66 = int_to_ptr.vmem [resolvable:$true] %s65
      %71 = dma.hbm_to_vmem [thread:$0]  %s64, 2048, %s66, [#allocation8], 128, 128, 8
    $region29: #{tpu_custom_call.1} parent=1 // pred_fallthru
      _
    // Predicated region
    $region30: #{tpu_custom_call.1} parent=1 // pred_check
      _
    $region31: #{tpu_custom_call.1} parent=1 // pred_check_branch
      %73 = sbr.rel (0) target = $region33
    $region32: #{tpu_custom_call.1} parent=1 // pred_region
      _
    $region33: #{tpu_custom_call.1} parent=1 // pred_fallthru
      _
    // Predicated region
    $region34: #{tpu_custom_call.1} parent=1 // pred_check
      _
    $region35: #{tpu_custom_call.1} parent=1 // pred_check_branch
      %75 = sbr.rel (0) target = $region37
    $region36: #{tpu_custom_call.1} parent=1 // pred_region
      %77 = dma.done [#allocation3], 1024
    $region37: #{tpu_custom_call.1} parent=1 // pred_fallthru
      _
    // Predicated region
    $region38: #{tpu_custom_call.1} parent=1 // pred_check
      _
    $region39: #{tpu_custom_call.1} parent=1 // pred_check_branch
      %79 = sbr.rel (0) target = $region41
    $region40: #{tpu_custom_call.1} parent=1 // pred_region
      %81 = dma.done [#allocation5], 16
    $region41: #{tpu_custom_call.1} parent=1 // pred_fallthru
      _
    // Predicated region
    $region42: #{tpu_custom_call.1} parent=1 // pred_check
      _
    $region43: #{tpu_custom_call.1} parent=1 // pred_check_branch
      %83 = sbr.rel (0) target = $region45
    $region44: #{tpu_custom_call.1} parent=1 // pred_region
      %85 = dma.done [#allocation8], 16384
    $region45: #{tpu_custom_call.1} parent=1 // pred_fallthru
      _
    // Predicated region
    $region46: #{tpu_custom_call.1} parent=1 // pred_check
      _
    $region47: #{tpu_custom_call.1} parent=1 // pred_check_branch
      %87 = sbr.rel (0) target = $region49
    $region48: #{tpu_custom_call.1} parent=1 // pred_region
      %89 = dma.done [#allocation8], 2048
    $region49: #{tpu_custom_call.1} parent=1 // pred_fallthru
      _
    %90 = sfence
    %v91 = vld [vmem:[%s0] sm:$0xff]
    %v92 = vld [vmem:[%s1] sm:$0xff]
    %s93 = sld [smem:[#allocation6]]
    %s94 = sld [smem:[#allocation6 + $0x1]]
    %v95 = vlaneseq
    %v96 = vand.u32 %v95, 127
    %v97 = vand.u32 %v96, 1
    %vm98 = vcmp.eq.s32.totalorder %v97, 0
    %v99 = vstv %s93
    %v100 = vstv %s94
    %v101 = vsel %vm98, %v99, %v100
    %v102 = vmax.f32 %v91, 0.0
    %v103 = vmin.f32 %v102, 511.0
    %v104 = vmul.f32 %v103, %v101
    %v105 = vlaneseq
    %v106 = vshrl.u32 %v105, 7
    %vm107 = vcmp.eq.s32.totalorder %v106, %v96
    %109 = vrot.lane.b32.xlu0 %v91, 2
    %v110 = vpop.permute.xlu0 %109
    %v112 = vsub.f32 %v91, %v110
    %114 = vrot.lane.b32.xlu0 %v112, 127
    %v115 = vpop.permute.xlu0 %114
    %v117 = vmul.f32 %v112, %v115
    %118 = vset.pattern.permute.xlu0 0
    %119 = vperm.xlu0 %118, %v91
    %v120 = vpop.permute.xlu0 %119
    %v122 = vsel %vm107, %v120, 0.0
    %vm123 = vcmask 64512
    %v124 = vsel %vm123, %v122, 0.0
    %v125 = vrot.slane %v124, 4
    %v126 = vadd.f32 %v124, %v125
    %v127 = vrot.slane %v126, 2
    %v128 = vadd.f32 %v126, %v127
    %v129 = vrot.slane %v128, 1
    %v130 = vadd.f32 %v128, %v129
    %131 = vset.pattern.permute.xlu0 1
    %132 = vperm.xlu0 %131, %v91
    %v133 = vpop.permute.xlu0 %132
    %v135 = vsel %vm107, %v133, 0.0
    %v136 = vsel %vm123, %v135, 0.0
    %v137 = vrot.slane %v136, 4
    %v138 = vadd.f32 %v136, %v137
    %v139 = vrot.slane %v138, 2
    %v140 = vadd.f32 %v138, %v139
    %v141 = vrot.slane %v140, 1
    %v142 = vadd.f32 %v140, %v141
    %143 = vset.pattern.permute.xlu0 2
    %144 = vperm.xlu0 %143, %v91
    %v145 = vpop.permute.xlu0 %144
    %v147 = vsel %vm107, %v145, 0.0
    %v148 = vsel %vm123, %v147, 0.0
    %v149 = vrot.slane %v148, 4
    %v150 = vadd.f32 %v148, %v149
    %v151 = vrot.slane %v150, 2
    %v152 = vadd.f32 %v150, %v151
    %v153 = vrot.slane %v152, 1
    %v154 = vadd.f32 %v152, %v153
    %155 = vset.pattern.permute.xlu0 3
    %156 = vperm.xlu0 %155, %v91
    %v157 = vpop.permute.xlu0 %156
    %v159 = vsel %vm107, %v157, 0.0
    %v160 = vsel %vm123, %v159, 0.0
    %v161 = vrot.slane %v160, 4
    %v162 = vadd.f32 %v160, %v161
    %v163 = vrot.slane %v162, 2
    %v164 = vadd.f32 %v162, %v163
    %v165 = vrot.slane %v164, 1
    %v166 = vadd.f32 %v164, %v165
    %168 = vset.pattern.permute.xlu0 2
    %169 = vperm.xlu0 %168, %v117
    %v170 = vpop.permute.xlu0 %169
    %v172 = vsel %vm107, %v170, 0.0
    %v173 = vsel %vm123, %v172, 0.0
    %v174 = vrot.slane %v173, 4
    %v175 = vadd.f32 %v173, %v174
    %v176 = vrot.slane %v175, 2
    %v177 = vadd.f32 %v175, %v176
    %v178 = vrot.slane %v177, 1
    %v179 = vadd.f32 %v177, %v178
    %v180 = vmin.f32 %v145, %v154
    %v181 = vmax.f32 %v120, %v130
    %v182 = vsub.f32 %v180, %v181
    %v183 = vmax.f32 %v182, 0.0
    %v184 = vmin.f32 %v157, %v166
    %v185 = vmax.f32 %v133, %v142
    %v186 = vsub.f32 %v184, %v185
    %v187 = vmax.f32 %v186, 0.0
    %v188 = vmul.f32 %v183, %v187
    %v189 = vadd.f32 %v170, %v179
    %v190 = vsub.f32 %v189, %v188
    %v191 = vadd.f32 %v190, 1e-09
    %v192 = vrcp.pop %v191
    %v193 = vmul.f32 %v188, %v192
    %v194 = vcvt.s32.f32 %v106
    %v195 = vcvt.s32.f32 %v96
    %vm196 = vcmp.gt.f32.partialorder %v92, 0.21
    %v197 = vsel %vm196, 1.0, 0.0
    %vm198 = vcmp.gt.f32.partialorder %v197, 0.5
    %v199 = vsel %vm198, %v92, -1e+30
    %vm200 = vcmask 7168
    %v201 = vsel %vm200, %v199, -inf
    %v202 = vrot.slane %v201, 4
    %v203 = vmax.f32 %v201, %v202
    %v204 = vrot.slane %v203, 2
    %v205 = vmax.f32 %v203, %v204
    %v206 = vrot.slane %v205, 1
    %v207 = vmax.f32 %v205, %v206
    %vm208 = vcmp.eq.f32.partialorder %v199, %v207
    %v209 = vsel %vm208, %v194, 8.0
    %v210 = vsel %vm200, %v209, inf
    %v211 = vrot.slane %v210, 4
    %v212 = vmin.f32 %v210, %v211
    %v213 = vrot.slane %v212, 2
    %v214 = vmin.f32 %v212, %v213
    %v215 = vrot.slane %v214, 1
    %v216 = vmin.f32 %v214, %v215
    %vm217 = vcmp.eq.f32.partialorder %v194, %v216
    %v218 = vsel %vm217, 1, 0
    %v219 = vcvt.s32.f32 %v218
    %v220 = vmul.f32 %v219, %v197
    %v221 = vmax.f32 %v220, 0.0
    %223 = vset.pattern.permute.xlu0 0
    %224 = vperm.xlu0 %223, %v216
    %v225 = vpop.permute.xlu0 %224
    %vm227 = vcmp.eq.f32.partialorder %v195, %v225
    %v228 = vsel %vm227, %v193, 0.0
    %v229 = vsel %vm123, %v228, 0.0
    %230 = vadd.xlane.f32.xlu0 %v229
    %v231 = vpop.xlane.xlu0 %230
    %vm232 = vcmp.gt.f32.partialorder %v231, 0.1
    %vm233 = vmor %vm232, %vm217
    %v234 = vsel %vm233, 1.0, 0.0
    %v235 = vsub.f32 1.0, %v234
    %v236 = vmul.f32 %v197, %v235
    %vm237 = vcmp.gt.f32.partialorder %v236, 0.5
    %v238 = vsel %vm237, %v92, -1e+30
    %v239 = vsel %vm200, %v238, -inf
    %v240 = vrot.slane %v239, 4
    %v241 = vmax.f32 %v239, %v240
    %v242 = vrot.slane %v241, 2
    %v243 = vmax.f32 %v241, %v242
    %v244 = vrot.slane %v243, 1
    %v245 = vmax.f32 %v243, %v244
    %vm246 = vcmp.eq.f32.partialorder %v238, %v245
    %v247 = vsel %vm246, %v194, 8.0
    %v248 = vsel %vm200, %v247, inf
    %v249 = vrot.slane %v248, 4
    %v250 = vmin.f32 %v248, %v249
    %v251 = vrot.slane %v250, 2
    %v252 = vmin.f32 %v250, %v251
    %v253 = vrot.slane %v252, 1
    %v254 = vmin.f32 %v252, %v253
    %vm255 = vcmp.eq.f32.partialorder %v194, %v254
    %v256 = vsel %vm255, 1, 0
    %v257 = vcvt.s32.f32 %v256
    %v258 = vmul.f32 %v257, %v236
    %v259 = vmax.f32 %v221, %v258
    %261 = vset.pattern.permute.xlu0 0
    %262 = vperm.xlu0 %261, %v254
    %v263 = vpop.permute.xlu0 %262
    %vm265 = vcmp.eq.f32.partialorder %v195, %v263
    %v266 = vsel %vm265, %v193, 0.0
    %v267 = vsel %vm123, %v266, 0.0
    %268 = vadd.xlane.f32.xlu0 %v267
    %v269 = vpop.xlane.xlu0 %268
    %vm270 = vcmp.gt.f32.partialorder %v269, 0.1
    %vm271 = vmor %vm270, %vm255
    %v272 = vsel %vm271, 1.0, 0.0
    %v273 = vsub.f32 1.0, %v272
    %v274 = vmul.f32 %v236, %v273
    %vm275 = vcmp.gt.f32.partialorder %v274, 0.5
    %v276 = vsel %vm275, %v92, -1e+30
    %v277 = vsel %vm200, %v276, -inf
    %v278 = vrot.slane %v277, 4
    %v279 = vmax.f32 %v277, %v278
    %v280 = vrot.slane %v279, 2
    %v281 = vmax.f32 %v279, %v280
    %v282 = vrot.slane %v281, 1
    %v283 = vmax.f32 %v281, %v282
    %vm284 = vcmp.eq.f32.partialorder %v276, %v283
    %v285 = vsel %vm284, %v194, 8.0
    %v286 = vsel %vm200, %v285, inf
    %v287 = vrot.slane %v286, 4
    %v288 = vmin.f32 %v286, %v287
    %v289 = vrot.slane %v288, 2
    %v290 = vmin.f32 %v288, %v289
    %v291 = vrot.slane %v290, 1
    %v292 = vmin.f32 %v290, %v291
    %vm293 = vcmp.eq.f32.partialorder %v194, %v292
    %v294 = vsel %vm293, 1, 0
    %v295 = vcvt.s32.f32 %v294
    %v296 = vmul.f32 %v295, %v274
    %v297 = vmax.f32 %v259, %v296
    %299 = vset.pattern.permute.xlu0 0
    %300 = vperm.xlu0 %299, %v292
    %v301 = vpop.permute.xlu0 %300
    %vm303 = vcmp.eq.f32.partialorder %v195, %v301
    %v304 = vsel %vm303, %v193, 0.0
    %v305 = vsel %vm123, %v304, 0.0
    %306 = vadd.xlane.f32.xlu0 %v305
    %v307 = vpop.xlane.xlu0 %306
    %vm308 = vcmp.gt.f32.partialorder %v307, 0.1
    %vm309 = vmor %vm308, %vm293
    %v310 = vsel %vm309, 1.0, 0.0
    %v311 = vsub.f32 1.0, %v310
    %v312 = vmul.f32 %v274, %v311
    %vm313 = vcmp.gt.f32.partialorder %v312, 0.5
    %v314 = vsel %vm313, %v92, -1e+30
    %v315 = vsel %vm200, %v314, -inf
    %v316 = vrot.slane %v315, 4
    %v317 = vmax.f32 %v315, %v316
    %v318 = vrot.slane %v317, 2
    %v319 = vmax.f32 %v317, %v318
    %v320 = vrot.slane %v319, 1
    %v321 = vmax.f32 %v319, %v320
    %vm322 = vcmp.eq.f32.partialorder %v314, %v321
    %v323 = vsel %vm322, %v194, 8.0
    %v324 = vsel %vm200, %v323, inf
    %v325 = vrot.slane %v324, 4
    %v326 = vmin.f32 %v324, %v325
    %v327 = vrot.slane %v326, 2
    %v328 = vmin.f32 %v326, %v327
    %v329 = vrot.slane %v328, 1
    %v330 = vmin.f32 %v328, %v329
    %vm331 = vcmp.eq.f32.partialorder %v194, %v330
    %v332 = vsel %vm331, 1, 0
    %v333 = vcvt.s32.f32 %v332
    %v334 = vmul.f32 %v333, %v312
    %v335 = vmax.f32 %v297, %v334
    %337 = vset.pattern.permute.xlu0 0
    %338 = vperm.xlu0 %337, %v330
    %v339 = vpop.permute.xlu0 %338
    %vm341 = vcmp.eq.f32.partialorder %v195, %v339
    %v342 = vsel %vm341, %v193, 0.0
    %v343 = vsel %vm123, %v342, 0.0
    %344 = vadd.xlane.f32.xlu0 %v343
    %v345 = vpop.xlane.xlu0 %344
    %vm346 = vcmp.gt.f32.partialorder %v345, 0.1
    %vm347 = vmor %vm346, %vm331
    %v348 = vsel %vm347, 1.0, 0.0
    %v349 = vsub.f32 1.0, %v348
    %v350 = vmul.f32 %v312, %v349
    %vm351 = vcmp.gt.f32.partialorder %v350, 0.5
    %v352 = vsel %vm351, %v92, -1e+30
    %v353 = vsel %vm200, %v352, -inf
    %v354 = vrot.slane %v353, 4
    %v355 = vmax.f32 %v353, %v354
    %v356 = vrot.slane %v355, 2
    %v357 = vmax.f32 %v355, %v356
    %v358 = vrot.slane %v357, 1
    %v359 = vmax.f32 %v357, %v358
    %vm360 = vcmp.eq.f32.partialorder %v352, %v359
    %v361 = vsel %vm360, %v194, 8.0
    %v362 = vsel %vm200, %v361, inf
    %v363 = vrot.slane %v362, 4
    %v364 = vmin.f32 %v362, %v363
    %v365 = vrot.slane %v364, 2
    %v366 = vmin.f32 %v364, %v365
    %v367 = vrot.slane %v366, 1
    %v368 = vmin.f32 %v366, %v367
    %vm369 = vcmp.eq.f32.partialorder %v194, %v368
    %v370 = vsel %vm369, 1, 0
    %v371 = vcvt.s32.f32 %v370
    %v372 = vmul.f32 %v371, %v350
    %v373 = vmax.f32 %v335, %v372
    %375 = vset.pattern.permute.xlu0 0
    %376 = vperm.xlu0 %375, %v368
    %v377 = vpop.permute.xlu0 %376
    %vm379 = vcmp.eq.f32.partialorder %v195, %v377
    %v380 = vsel %vm379, %v193, 0.0
    %v381 = vsel %vm123, %v380, 0.0
    %382 = vadd.xlane.f32.xlu0 %v381
    %v383 = vpop.xlane.xlu0 %382
    %vm384 = vcmp.gt.f32.partialorder %v383, 0.1
    %vm385 = vmor %vm384, %vm369
    %v386 = vsel %vm385, 1.0, 0.0
    %v387 = vsub.f32 1.0, %v386
    %v388 = vmul.f32 %v350, %v387
    %vm389 = vcmp.gt.f32.partialorder %v388, 0.5
    %v390 = vsel %vm389, %v92, -1e+30
    %v391 = vsel %vm200, %v390, -inf
    %v392 = vrot.slane %v391, 4
    %v393 = vmax.f32 %v391, %v392
    %v394 = vrot.slane %v393, 2
    %v395 = vmax.f32 %v393, %v394
    %v396 = vrot.slane %v395, 1
    %v397 = vmax.f32 %v395, %v396
    %vm398 = vcmp.eq.f32.partialorder %v390, %v397
    %v399 = vsel %vm398, %v194, 8.0
    %v400 = vsel %vm200, %v399, inf
    %v401 = vrot.slane %v400, 4
    %v402 = vmin.f32 %v400, %v401
    %v403 = vrot.slane %v402, 2
    %v404 = vmin.f32 %v402, %v403
    %v405 = vrot.slane %v404, 1
    %v406 = vmin.f32 %v404, %v405
    %vm407 = vcmp.eq.f32.partialorder %v194, %v406
    %v408 = vsel %vm407, 1, 0
    %v409 = vcvt.s32.f32 %v408
    %v410 = vmul.f32 %v409, %v388
    %v411 = vmax.f32 %v373, %v410
    %413 = vset.pattern.permute.xlu0 0
    %414 = vperm.xlu0 %413, %v406
    %v415 = vpop.permute.xlu0 %414
    %vm417 = vcmp.eq.f32.partialorder %v195, %v415
    %v418 = vsel %vm417, %v193, 0.0
    %v419 = vsel %vm123, %v418, 0.0
    %420 = vadd.xlane.f32.xlu0 %v419
    %v421 = vpop.xlane.xlu0 %420
    %vm422 = vcmp.gt.f32.partialorder %v421, 0.1
    %vm423 = vmor %vm422, %vm407
    %v424 = vsel %vm423, 1.0, 0.0
    %v425 = vsub.f32 1.0, %v424
    %v426 = vmul.f32 %v388, %v425
    %vm427 = vcmp.gt.f32.partialorder %v426, 0.5
    %v428 = vsel %vm427, %v92, -1e+30
    %v429 = vsel %vm200, %v428, -inf
    %v430 = vrot.slane %v429, 4
    %v431 = vmax.f32 %v429, %v430
    %v432 = vrot.slane %v431, 2
    %v433 = vmax.f32 %v431, %v432
    %v434 = vrot.slane %v433, 1
    %v435 = vmax.f32 %v433, %v434
    %vm436 = vcmp.eq.f32.partialorder %v428, %v435
    %v437 = vsel %vm436, %v194, 8.0
    %v438 = vsel %vm200, %v437, inf
    %v439 = vrot.slane %v438, 4
    %v440 = vmin.f32 %v438, %v439
    %v441 = vrot.slane %v440, 2
    %v442 = vmin.f32 %v440, %v441
    %v443 = vrot.slane %v442, 1
    %v444 = vmin.f32 %v442, %v443
    %vm445 = vcmp.eq.f32.partialorder %v194, %v444
    %v446 = vsel %vm445, 1, 0
    %v447 = vcvt.s32.f32 %v446
    %v448 = vmul.f32 %v447, %v426
    %v449 = vmax.f32 %v411, %v448
    %451 = vset.pattern.permute.xlu0 0
    %452 = vperm.xlu0 %451, %v444
    %v453 = vpop.permute.xlu0 %452
    %vm455 = vcmp.eq.f32.partialorder %v195, %v453
    %v456 = vsel %vm455, %v193, 0.0
    %v457 = vsel %vm123, %v456, 0.0
    %458 = vadd.xlane.f32.xlu0 %v457
    %v459 = vpop.xlane.xlu0 %458
    %vm460 = vcmp.gt.f32.partialorder %v459, 0.1
    %vm461 = vmor %vm460, %vm445
    %v462 = vsel %vm461, 1.0, 0.0
    %v463 = vsub.f32 1.0, %v462
    %v464 = vmul.f32 %v426, %v463
    %vm465 = vcmp.gt.f32.partialorder %v464, 0.5
    %v466 = vsel %vm465, %v92, -1e+30
    %v467 = vsel %vm200, %v466, -inf
    %v468 = vrot.slane %v467, 4
    %v469 = vmax.f32 %v467, %v468
    %v470 = vrot.slane %v469, 2
    %v471 = vmax.f32 %v469, %v470
    %v472 = vrot.slane %v471, 1
    %v473 = vmax.f32 %v471, %v472
    %vm474 = vcmp.eq.f32.partialorder %v466, %v473
    %v475 = vsel %vm474, %v194, 8.0
    %v476 = vsel %vm200, %v475, inf
    %v477 = vrot.slane %v476, 4
    %v478 = vmin.f32 %v476, %v477
    %v479 = vrot.slane %v478, 2
    %v480 = vmin.f32 %v478, %v479
    %v481 = vrot.slane %v480, 1
    %v482 = vmin.f32 %v480, %v481
    %vm483 = vcmp.eq.f32.partialorder %v194, %v482
    %v484 = vsel %vm483, 1, 0
    %v485 = vcvt.s32.f32 %v484
    %v486 = vmul.f32 %v485, %v464
    %v487 = vmax.f32 %v449, %v486
    %v488 = vld [vmem:[#allocation2] sm:$0xff]
    %v489 = vld [vmem:[#allocation2 + $0x8] sm:$0xff]
    %v490 = vld [vmem:[#allocation2 + $0x10] sm:$0xff]
    %v491 = vld [vmem:[#allocation2 + $0x18] sm:$0xff]
    %v492 = vld [vmem:[#allocation2 + $0x20] sm:$0xff]
    %v493 = vld [vmem:[#allocation2 + $0x28] sm:$0xff]
    %v494 = vld [vmem:[#allocation2 + $0x30] sm:$0xff]
    %v495 = vld [vmem:[#allocation2 + $0x38] sm:$0xff]
    %v496 = vld [vmem:[#allocation7] sm:$0xff]
    %v497 = vld [vmem:[#allocation7 + $0x8] sm:$0xff]
    %v498 = vld [vmem:[#allocation7 + $0x10] sm:$0xff]
    %v499 = vld [vmem:[#allocation7 + $0x18] sm:$0xff]
    %v500 = vld [vmem:[#allocation7 + $0x20] sm:$0xff]
    %v501 = vld [vmem:[#allocation7 + $0x28] sm:$0xff]
    %v502 = vld [vmem:[#allocation7 + $0x30] sm:$0xff]
    %v503 = vld [vmem:[#allocation7 + $0x38] sm:$0xff]
    %v504 = vld [vmem:[#allocation7 + $0x40] sm:$0xff]
    %v505 = vld [vmem:[#allocation7 + $0x48] sm:$0xff]
    %v506 = vld [vmem:[#allocation7 + $0x50] sm:$0xff]
    %v507 = vld [vmem:[#allocation7 + $0x58] sm:$0xff]
    %v508 = vld [vmem:[#allocation7 + $0x60] sm:$0xff]
    %v509 = vld [vmem:[#allocation7 + $0x68] sm:$0xff]
    %v510 = vld [vmem:[#allocation7 + $0x70] sm:$0xff]
    %v511 = vld [vmem:[#allocation7 + $0x78] sm:$0xff]
    %v512 = vld [vmem:[#allocation7 + $0x80] sm:$0xff]
    %v513 = vld [vmem:[#allocation7 + $0x88] sm:$0xff]
    %v514 = vld [vmem:[#allocation7 + $0x90] sm:$0xff]
    %v515 = vld [vmem:[#allocation7 + $0x98] sm:$0xff]
    %v516 = vld [vmem:[#allocation7 + $0xa0] sm:$0xff]
    %v517 = vld [vmem:[#allocation7 + $0xa8] sm:$0xff]
    %v518 = vld [vmem:[#allocation7 + $0xb0] sm:$0xff]
    %v519 = vld [vmem:[#allocation7 + $0xb8] sm:$0xff]
    %v520 = vld [vmem:[#allocation7 + $0xc0] sm:$0xff]
    %v521 = vld [vmem:[#allocation7 + $0xc8] sm:$0xff]
    %v522 = vld [vmem:[#allocation7 + $0xd0] sm:$0xff]
    %v523 = vld [vmem:[#allocation7 + $0xd8] sm:$0xff]
    %v524 = vld [vmem:[#allocation7 + $0xe0] sm:$0xff]
    %v525 = vld [vmem:[#allocation7 + $0xe8] sm:$0xff]
    %v526 = vld [vmem:[#allocation7 + $0xf0] sm:$0xff]
    %v527 = vld [vmem:[#allocation7 + $0xf8] sm:$0xff]
    %v528 = vld [vmem:[#allocation7 + $0x100] sm:$0xff]
    %v529 = vld [vmem:[#allocation7 + $0x108] sm:$0xff]
    %v530 = vld [vmem:[#allocation7 + $0x110] sm:$0xff]
    %v531 = vld [vmem:[#allocation7 + $0x118] sm:$0xff]
    %v532 = vld [vmem:[#allocation7 + $0x120] sm:$0xff]
    %v533 = vld [vmem:[#allocation7 + $0x128] sm:$0xff]
    %v534 = vld [vmem:[#allocation7 + $0x130] sm:$0xff]
    %v535 = vld [vmem:[#allocation7 + $0x138] sm:$0xff]
    %v536 = vld [vmem:[#allocation7 + $0x140] sm:$0xff]
    %v537 = vld [vmem:[#allocation7 + $0x148] sm:$0xff]
    %v538 = vld [vmem:[#allocation7 + $0x150] sm:$0xff]
    %v539 = vld [vmem:[#allocation7 + $0x158] sm:$0xff]
    %v540 = vld [vmem:[#allocation7 + $0x160] sm:$0xff]
    %v541 = vld [vmem:[#allocation7 + $0x168] sm:$0xff]
    %v542 = vld [vmem:[#allocation7 + $0x170] sm:$0xff]
    %v543 = vld [vmem:[#allocation7 + $0x178] sm:$0xff]
    %v544 = vld [vmem:[#allocation7 + $0x180] sm:$0xff]
    %v545 = vld [vmem:[#allocation7 + $0x188] sm:$0xff]
    %v546 = vld [vmem:[#allocation7 + $0x190] sm:$0xff]
    %v547 = vld [vmem:[#allocation7 + $0x198] sm:$0xff]
    %v548 = vld [vmem:[#allocation7 + $0x1a0] sm:$0xff]
    %v549 = vld [vmem:[#allocation7 + $0x1a8] sm:$0xff]
    %v550 = vld [vmem:[#allocation7 + $0x1b0] sm:$0xff]
    %v551 = vld [vmem:[#allocation7 + $0x1b8] sm:$0xff]
    %v552 = vld [vmem:[#allocation7 + $0x1c0] sm:$0xff]
    %v553 = vld [vmem:[#allocation7 + $0x1c8] sm:$0xff]
    %v554 = vld [vmem:[#allocation7 + $0x1d0] sm:$0xff]
    %v555 = vld [vmem:[#allocation7 + $0x1d8] sm:$0xff]
    %v556 = vld [vmem:[#allocation7 + $0x1e0] sm:$0xff]
    %v557 = vld [vmem:[#allocation7 + $0x1e8] sm:$0xff]
    %v558 = vld [vmem:[#allocation7 + $0x1f0] sm:$0xff]
    %v559 = vld [vmem:[#allocation7 + $0x1f8] sm:$0xff]
    %v560 = vld [vmem:[#allocation7 + $0x200] sm:$0xff]
    %v561 = vld [vmem:[#allocation7 + $0x208] sm:$0xff]
    %v562 = vld [vmem:[#allocation7 + $0x210] sm:$0xff]
    %v563 = vld [vmem:[#allocation7 + $0x218] sm:$0xff]
    %v564 = vld [vmem:[#allocation7 + $0x220] sm:$0xff]
    %v565 = vld [vmem:[#allocation7 + $0x228] sm:$0xff]
    %v566 = vld [vmem:[#allocation7 + $0x230] sm:$0xff]
    %v567 = vld [vmem:[#allocation7 + $0x238] sm:$0xff]
    %v568 = vld [vmem:[#allocation7 + $0x240] sm:$0xff]
    %v569 = vld [vmem:[#allocation7 + $0x248] sm:$0xff]
    %v570 = vld [vmem:[#allocation7 + $0x250] sm:$0xff]
    %v571 = vld [vmem:[#allocation7 + $0x258] sm:$0xff]
    %v572 = vld [vmem:[#allocation7 + $0x260] sm:$0xff]
    %v573 = vld [vmem:[#allocation7 + $0x268] sm:$0xff]
    %v574 = vld [vmem:[#allocation7 + $0x270] sm:$0xff]
    %v575 = vld [vmem:[#allocation7 + $0x278] sm:$0xff]
    %v576 = vld [vmem:[#allocation7 + $0x280] sm:$0xff]
    %v577 = vld [vmem:[#allocation7 + $0x288] sm:$0xff]
    %v578 = vld [vmem:[#allocation7 + $0x290] sm:$0xff]
    %v579 = vld [vmem:[#allocation7 + $0x298] sm:$0xff]
    %v580 = vld [vmem:[#allocation7 + $0x2a0] sm:$0xff]
    %v581 = vld [vmem:[#allocation7 + $0x2a8] sm:$0xff]
    %v582 = vld [vmem:[#allocation7 + $0x2b0] sm:$0xff]
    %v583 = vld [vmem:[#allocation7 + $0x2b8] sm:$0xff]
    %v584 = vld [vmem:[#allocation7 + $0x2c0] sm:$0xff]
    %v585 = vld [vmem:[#allocation7 + $0x2c8] sm:$0xff]
    %v586 = vld [vmem:[#allocation7 + $0x2d0] sm:$0xff]
    %v587 = vld [vmem:[#allocation7 + $0x2d8] sm:$0xff]
    %v588 = vld [vmem:[#allocation7 + $0x2e0] sm:$0xff]
    %v589 = vld [vmem:[#allocation7 + $0x2e8] sm:$0xff]
    %v590 = vld [vmem:[#allocation7 + $0x2f0] sm:$0xff]
    %v591 = vld [vmem:[#allocation7 + $0x2f8] sm:$0xff]
    %v592 = vld [vmem:[#allocation7 + $0x300] sm:$0xff]
    %v593 = vld [vmem:[#allocation7 + $0x308] sm:$0xff]
    %v594 = vld [vmem:[#allocation7 + $0x310] sm:$0xff]
    %v595 = vld [vmem:[#allocation7 + $0x318] sm:$0xff]
    %v596 = vld [vmem:[#allocation7 + $0x320] sm:$0xff]
    %v597 = vld [vmem:[#allocation7 + $0x328] sm:$0xff]
    %v598 = vld [vmem:[#allocation7 + $0x330] sm:$0xff]
    %v599 = vld [vmem:[#allocation7 + $0x338] sm:$0xff]
    %v600 = vld [vmem:[#allocation7 + $0x340] sm:$0xff]
    %v601 = vld [vmem:[#allocation7 + $0x348] sm:$0xff]
    %v602 = vld [vmem:[#allocation7 + $0x350] sm:$0xff]
    %v603 = vld [vmem:[#allocation7 + $0x358] sm:$0xff]
    %v604 = vld [vmem:[#allocation7 + $0x360] sm:$0xff]
    %v605 = vld [vmem:[#allocation7 + $0x368] sm:$0xff]
    %v606 = vld [vmem:[#allocation7 + $0x370] sm:$0xff]
    %v607 = vld [vmem:[#allocation7 + $0x378] sm:$0xff]
    %v608 = vld [vmem:[#allocation7 + $0x380] sm:$0xff]
    %v609 = vld [vmem:[#allocation7 + $0x388] sm:$0xff]
    %v610 = vld [vmem:[#allocation7 + $0x390] sm:$0xff]
    %v611 = vld [vmem:[#allocation7 + $0x398] sm:$0xff]
    %v612 = vld [vmem:[#allocation7 + $0x3a0] sm:$0xff]
    %v613 = vld [vmem:[#allocation7 + $0x3a8] sm:$0xff]
    %v614 = vld [vmem:[#allocation7 + $0x3b0] sm:$0xff]
    %v615 = vld [vmem:[#allocation7 + $0x3b8] sm:$0xff]
    %v616 = vld [vmem:[#allocation7 + $0x3c0] sm:$0xff]
    %v617 = vld [vmem:[#allocation7 + $0x3c8] sm:$0xff]
    %v618 = vld [vmem:[#allocation7 + $0x3d0] sm:$0xff]
    %v619 = vld [vmem:[#allocation7 + $0x3d8] sm:$0xff]
    %v620 = vld [vmem:[#allocation7 + $0x3e0] sm:$0xff]
    %v621 = vld [vmem:[#allocation7 + $0x3e8] sm:$0xff]
    %v622 = vld [vmem:[#allocation7 + $0x3f0] sm:$0xff]
    %v623 = vld [vmem:[#allocation7 + $0x3f8] sm:$0xff]
    %v624 = vld [vmem:[%s5] sm:$0x1]
    %v626 = vperm.slane %v624, 0
    %628 = vmatpush.msra.mxu0 %v511
    %629 = vmatpush.msra.mxu0 %v510
    %630 = vmatpush.msra.mxu0 %v509
    %631 = vmatpush.msra.mxu0 %v508
    %632 = vmatpush.msra.mxu0 %v507
    %633 = vmatpush.msra.mxu0 %v506
    %634 = vmatpush.msra.mxu0 %v505
    %635 = vmatpush.msra.mxu0 %v504
    %636 = vmatpush.msra.mxu0 %v503
    %637 = vmatpush.msra.mxu0 %v502
    %638 = vmatpush.msra.mxu0 %v501
    %639 = vmatpush.msra.mxu0 %v500
    %640 = vmatpush.msra.mxu0 %v499
    %641 = vmatpush.msra.mxu0 %v498
    %642 = vmatpush.msra.mxu0 %v497
    %643 = vmatpush.msra.mxu0 %v496
    %644 = vmatmul.f32.gmra.mxu0 %v488
    %v645 = vpop.f32.mrf.mxu0
    %v646 = vadd.f32 %v626, %v645
    %647 = vdwg.mxu0
    %648 = vmatpush.msra.mxu0 %v527
    %649 = vmatpush.msra.mxu0 %v526
    %650 = vmatpush.msra.mxu0 %v525
    %651 = vmatpush.msra.mxu0 %v524
    %652 = vmatpush.msra.mxu0 %v523
    %653 = vmatpush.msra.mxu0 %v522
    %654 = vmatpush.msra.mxu0 %v521
    %655 = vmatpush.msra.mxu0 %v520
    %656 = vmatpush.msra.mxu0 %v519
    %657 = vmatpush.msra.mxu0 %v518
    %658 = vmatpush.msra.mxu0 %v517
    %659 = vmatpush.msra.mxu0 %v516
    %660 = vmatpush.msra.mxu0 %v515
    %661 = vmatpush.msra.mxu0 %v514
    %662 = vmatpush.msra.mxu0 %v513
    %663 = vmatpush.msra.mxu0 %v512
    %664 = vmatmul.f32.gmra.mxu0 %v489
    %v665 = vpop.f32.mrf.mxu0
    %v666 = vadd.f32 %v646, %v665
    %667 = vdwg.mxu0
    %668 = vmatpush.msra.mxu0 %v543
    %669 = vmatpush.msra.mxu0 %v542
    %670 = vmatpush.msra.mxu0 %v541
    %671 = vmatpush.msra.mxu0 %v540
    %672 = vmatpush.msra.mxu0 %v539
    %673 = vmatpush.msra.mxu0 %v538
    %674 = vmatpush.msra.mxu0 %v537
    %675 = vmatpush.msra.mxu0 %v536
    %676 = vmatpush.msra.mxu0 %v535
    %677 = vmatpush.msra.mxu0 %v534
    %678 = vmatpush.msra.mxu0 %v533
    %679 = vmatpush.msra.mxu0 %v532
    %680 = vmatpush.msra.mxu0 %v531
    %681 = vmatpush.msra.mxu0 %v530
    %682 = vmatpush.msra.mxu0 %v529
    %683 = vmatpush.msra.mxu0 %v528
    %684 = vmatmul.f32.gmra.mxu0 %v490
    %v685 = vpop.f32.mrf.mxu0
    %v686 = vadd.f32 %v666, %v685
    %687 = vdwg.mxu0
    %688 = vmatpush.msra.mxu0 %v559
    %689 = vmatpush.msra.mxu0 %v558
    %690 = vmatpush.msra.mxu0 %v557
    %691 = vmatpush.msra.mxu0 %v556
    %692 = vmatpush.msra.mxu0 %v555
    %693 = vmatpush.msra.mxu0 %v554
    %694 = vmatpush.msra.mxu0 %v553
    %695 = vmatpush.msra.mxu0 %v552
    %696 = vmatpush.msra.mxu0 %v551
    %697 = vmatpush.msra.mxu0 %v550
    %698 = vmatpush.msra.mxu0 %v549
    %699 = vmatpush.msra.mxu0 %v548
    %700 = vmatpush.msra.mxu0 %v547
    %701 = vmatpush.msra.mxu0 %v546
    %702 = vmatpush.msra.mxu0 %v545
    %703 = vmatpush.msra.mxu0 %v544
    %704 = vmatmul.f32.gmra.mxu0 %v491
    %v705 = vpop.f32.mrf.mxu0
    %v706 = vadd.f32 %v686, %v705
    %707 = vdwg.mxu0
    %708 = vmatpush.msra.mxu0 %v575
    %709 = vmatpush.msra.mxu0 %v574
    %710 = vmatpush.msra.mxu0 %v573
    %711 = vmatpush.msra.mxu0 %v572
    %712 = vmatpush.msra.mxu0 %v571
    %713 = vmatpush.msra.mxu0 %v570
    %714 = vmatpush.msra.mxu0 %v569
    %715 = vmatpush.msra.mxu0 %v568
    %716 = vmatpush.msra.mxu0 %v567
    %717 = vmatpush.msra.mxu0 %v566
    %718 = vmatpush.msra.mxu0 %v565
    %719 = vmatpush.msra.mxu0 %v564
    %720 = vmatpush.msra.mxu0 %v563
    %721 = vmatpush.msra.mxu0 %v562
    %722 = vmatpush.msra.mxu0 %v561
    %723 = vmatpush.msra.mxu0 %v560
    %724 = vmatmul.f32.gmra.mxu0 %v492
    %v725 = vpop.f32.mrf.mxu0
    %v726 = vadd.f32 %v706, %v725
    %727 = vdwg.mxu0
    %728 = vmatpush.msra.mxu0 %v591
    %729 = vmatpush.msra.mxu0 %v590
    %730 = vmatpush.msra.mxu0 %v589
    %731 = vmatpush.msra.mxu0 %v588
    %732 = vmatpush.msra.mxu0 %v587
    %733 = vmatpush.msra.mxu0 %v586
    %734 = vmatpush.msra.mxu0 %v585
    %735 = vmatpush.msra.mxu0 %v584
    %736 = vmatpush.msra.mxu0 %v583
    %737 = vmatpush.msra.mxu0 %v582
    %738 = vmatpush.msra.mxu0 %v581
    %739 = vmatpush.msra.mxu0 %v580
    %740 = vmatpush.msra.mxu0 %v579
    %741 = vmatpush.msra.mxu0 %v578
    %742 = vmatpush.msra.mxu0 %v577
    %743 = vmatpush.msra.mxu0 %v576
    %744 = vmatmul.f32.gmra.mxu0 %v493
    %v745 = vpop.f32.mrf.mxu0
    %v746 = vadd.f32 %v726, %v745
    %747 = vdwg.mxu0
    %748 = vmatpush.msra.mxu0 %v607
    %749 = vmatpush.msra.mxu0 %v606
    %750 = vmatpush.msra.mxu0 %v605
    %751 = vmatpush.msra.mxu0 %v604
    %752 = vmatpush.msra.mxu0 %v603
    %753 = vmatpush.msra.mxu0 %v602
    %754 = vmatpush.msra.mxu0 %v601
    %755 = vmatpush.msra.mxu0 %v600
    %756 = vmatpush.msra.mxu0 %v599
    %757 = vmatpush.msra.mxu0 %v598
    %758 = vmatpush.msra.mxu0 %v597
    %759 = vmatpush.msra.mxu0 %v596
    %760 = vmatpush.msra.mxu0 %v595
    %761 = vmatpush.msra.mxu0 %v594
    %762 = vmatpush.msra.mxu0 %v593
    %763 = vmatpush.msra.mxu0 %v592
    %764 = vmatmul.f32.gmra.mxu0 %v494
    %v765 = vpop.f32.mrf.mxu0
    %v766 = vadd.f32 %v746, %v765
    %767 = vdwg.mxu0
    %768 = vmatpush.msra.mxu0 %v623
    %769 = vmatpush.msra.mxu0 %v622
    %770 = vmatpush.msra.mxu0 %v621
    %771 = vmatpush.msra.mxu0 %v620
    %772 = vmatpush.msra.mxu0 %v619
    %773 = vmatpush.msra.mxu0 %v618
    %774 = vmatpush.msra.mxu0 %v617
    %775 = vmatpush.msra.mxu0 %v616
    %776 = vmatpush.msra.mxu0 %v615
    %777 = vmatpush.msra.mxu0 %v614
    %778 = vmatpush.msra.mxu0 %v613
    %779 = vmatpush.msra.mxu0 %v612
    %780 = vmatpush.msra.mxu0 %v611
    %781 = vmatpush.msra.mxu0 %v610
    %782 = vmatpush.msra.mxu0 %v609
    %783 = vmatpush.msra.mxu0 %v608
    %784 = vmatmul.f32.gmra.mxu0 %v495
    %v785 = vpop.f32.mrf.mxu0
    %v786 = vadd.f32 %v766, %v785
    %787 = vdwg.mxu0
    %v788 = vmax.f32 %v786, 0.0
    %v789 = vld [vmem:[#allocation9] sm:$0xff]
    %v790 = vld [vmem:[#allocation9 + $0x8] sm:$0xff]
    %v791 = vld [vmem:[#allocation9 + $0x10] sm:$0xff]
    %v792 = vld [vmem:[#allocation9 + $0x18] sm:$0xff]
    %v793 = vld [vmem:[#allocation9 + $0x20] sm:$0xff]
    %v794 = vld [vmem:[#allocation9 + $0x28] sm:$0xff]
    %v795 = vld [vmem:[#allocation9 + $0x30] sm:$0xff]
    %v796 = vld [vmem:[#allocation9 + $0x38] sm:$0xff]
    %v797 = vld [vmem:[#allocation9 + $0x40] sm:$0xff]
    %v798 = vld [vmem:[#allocation9 + $0x48] sm:$0xff]
    %v799 = vld [vmem:[#allocation9 + $0x50] sm:$0xff]
    %v800 = vld [vmem:[#allocation9 + $0x58] sm:$0xff]
    %v801 = vld [vmem:[#allocation9 + $0x60] sm:$0xff]
    %v802 = vld [vmem:[#allocation9 + $0x68] sm:$0xff]
    %v803 = vld [vmem:[#allocation9 + $0x70] sm:$0xff]
    %v804 = vld [vmem:[#allocation9 + $0x78] sm:$0xff]
    %v805 = vld [vmem:[%s7] sm:$0x1]
    %v807 = vperm.slane %v805, 0
    %809 = vmatpush.msra.mxu0 %v804
    %810 = vmatpush.msra.mxu0 %v803
    %811 = vmatpush.msra.mxu0 %v802
    %812 = vmatpush.msra.mxu0 %v801
    %813 = vmatpush.msra.mxu0 %v800
    %814 = vmatpush.msra.mxu0 %v799
    %815 = vmatpush.msra.mxu0 %v798
    %816 = vmatpush.msra.mxu0 %v797
    %817 = vmatpush.msra.mxu0 %v796
    %818 = vmatpush.msra.mxu0 %v795
    %819 = vmatpush.msra.mxu0 %v794
    %820 = vmatpush.msra.mxu0 %v793
    %821 = vmatpush.msra.mxu0 %v792
    %822 = vmatpush.msra.mxu0 %v791
    %823 = vmatpush.msra.mxu0 %v790
    %824 = vmatpush.msra.mxu0 %v789
    %825 = vmatmul.f32.gmra.mxu0 %v788
    %v826 = vpop.f32.mrf.mxu0
    %v827 = vadd.f32 %v807, %v826
    %828 = vdwg.mxu0
    %829 = vmax.xlane.f32.xlu0 %v827
    %v830 = vpop.xlane.xlu0 %829
    %v831 = vsub.f32 %v827, %v830
    %v832 = vmul.f32 %v831, 1.442695
    %v833 = vpow.pop %v832
    %834 = vadd.xlane.f32.xlu0 %v833
    %v835 = vpop.xlane.xlu0 %834
    %v836 = vrcp.pop %v835
    %v837 = vmul.f32 %v833, %v836
    %838 = vst [vmem:[#allocation10] sm:$0xff] %v837
    %vm839 = vcmp.eq.f32.partialorder %v827, %v830
    %v840 = vsel %vm839, %v195, 128.0
    %841 = vmin.xlane.f32.xlu0 %v840
    %v842 = vpop.xlane.xlu0 %841
    %843 = vmax.xlane.f32.xlu0 %v837
    %v844 = vpop.xlane.xlu0 %843
    %845 = vst [vmem:[#allocation11] sm:$0xff] 0.0
    %vm846 = vcmask 31744
    %847 = vst.msk [vmem:[#allocation11] sm:$0xff] %vm846, %v104
    %849 = vrot.lane.b32.xlu0 %v487, 4
    %v850 = vpop.permute.xlu0 %849
    %vm852 = vcmask 39968
    %853 = vst.msk [vmem:[#allocation11] sm:$0xff] %vm852, %v850
    %vm854 = vcmask 48168
    %855 = vst.msk [vmem:[#allocation11] sm:$0xff] %vm854, %v842
    %vm856 = vcmask 56368
    %857 = vst.msk [vmem:[#allocation11] sm:$0xff] %vm856, %v844
    %859 = vrot.lane.b32.xlu0 %v92, 7
    %v860 = vpop.permute.xlu0 %859
    %vm862 = vcmask 64568
    %863 = vst.msk [vmem:[#allocation11] sm:$0xff] %vm862, %v860
    // Predicated region
    $region50: #{tpu_custom_call.1} parent=1 // pred_check
      _
    $region51: #{tpu_custom_call.1} parent=1 // pred_check_branch
      %865 = sbr.rel (0) target = $region53
    $region52: #{tpu_custom_call.1} parent=1 // pred_region
      %867 = vsyncadd [#allocation4], 0
      %s869 = sshll.u32 [#allocation10], 4
      %s870 = int_to_ptr.vmem [resolvable:$true] %s869
      %s871 = sshll.u32 %s8, 4
      %s872 = int_to_ptr.hbm [resolvable:$true] %s871
      %874 = dma.vmem_to_hbm [thread:$0]  %s870, 128, %s872, [#allocation4]
    $region53: #{tpu_custom_call.1} parent=1 // pred_fallthru
      _
    // Predicated region
    $region54: #{tpu_custom_call.1} parent=1 // pred_check
      _
    $region55: #{tpu_custom_call.1} parent=1 // pred_check_branch
      %876 = sbr.rel (0) target = $region57
    $region56: #{tpu_custom_call.1} parent=1 // pred_region
      %878 = vsyncadd [#allocation12], 0
      %s880 = sshll.u32 [#allocation11], 4
      %s881 = int_to_ptr.vmem [resolvable:$true] %s880
      %s882 = sshll.u32 %s9, 4
      %s883 = int_to_ptr.hbm [resolvable:$true] %s882
      %885 = dma.vmem_to_hbm [thread:$0]  %s881, 128, %s883, [#allocation12]
    $region57: #{tpu_custom_call.1} parent=1 // pred_fallthru
      _
    // Predicated region
    $region58: #{tpu_custom_call.1} parent=1 // pred_check
      _
    $region59: #{tpu_custom_call.1} parent=1 // pred_check_branch
      %887 = sbr.rel (0) target = $region61
    $region60: #{tpu_custom_call.1} parent=1 // pred_region
      %889 = dma.done [#allocation4], 128
    $region61: #{tpu_custom_call.1} parent=1 // pred_fallthru
      _
    // Predicated region
    $region62: #{tpu_custom_call.1} parent=1 // pred_check
      _
    $region63: #{tpu_custom_call.1} parent=1 // pred_check_branch
      %891 = sbr.rel (0) target = $region65
    $region64: #{tpu_custom_call.1} parent=1 // pred_region
      %893 = dma.done [#allocation12], 128
    $region65: #{tpu_custom_call.1} parent=1 // pred_fallthru
      _
    %894 = vsyncpa [#allocation3], 1
    %895 = vsyncpa [#allocation8], 1
    %896 = vsyncpa [#allocation4], 1
    %897 = vsyncpa [#allocation12], 1
    %898 = vsyncpa [#allocation5], 1

</llo_original>
